<compile_context>
chip_gen: v7x
topology: tpu7x:2x2x1
jax: 0.10.0
libtpu: 0.0.40
codegen_flags: <defaults>
</compile_context>

<pallas_src>
import jax
import jax.numpy as jnp
import numpy as np
from jax.experimental import pallas as pl
from jax.experimental.pallas import tpu as pltpu


# ----------------------------- Pallas kernels ------------------------------

def _conv_pool_relu_kernel(w_ref, b_ref, p00_ref, p01_ref, p10_ref, p11_ref, o_ref):
    """Fused conv-as-matmul + bias + 2x2 maxpool + relu.

    w:   (Cout_pad, K)   packed / zero-padded conv weights
    b:   (Cout_pad, 1)   bias (f32)
    pXY: (K, TM)         im2col patches for pool phase (X, Y)
    o:   (Cout_pad, TM)  relu(max_phase(w @ pXY) + b), f32, lane-dense in TM
    """
    w = w_ref[...]
    y = jnp.dot(w, p00_ref[...], preferred_element_type=jnp.float32)
    y = jnp.maximum(y, jnp.dot(w, p01_ref[...], preferred_element_type=jnp.float32))
    y = jnp.maximum(y, jnp.dot(w, p10_ref[...], preferred_element_type=jnp.float32))
    y = jnp.maximum(y, jnp.dot(w, p11_ref[...], preferred_element_type=jnp.float32))
    o_ref[...] = jnp.maximum(y + b_ref[...], 0.0).astype(o_ref.dtype)


def _matmul_bias_kernel(w_ref, b_ref, x_ref, o_ref):
    """(Cout_pad, K) @ (K, TM) + (Cout_pad, 1); f32 accumulation, lane-dense out."""
    o_ref[...] = (
        jnp.dot(w_ref[...], x_ref[...], preferred_element_type=jnp.float32)
        + b_ref[...]
    ).astype(o_ref.dtype)


# ------------------------------ Pallas wrappers -----------------------------

# Blocks default to VMEM; grid axis is independent work -> "parallel" (megacore).
_PARALLEL_1D = pltpu.CompilerParams(dimension_semantics=("parallel",))


def _pick_tile(m, max_tile=512):
    """Largest (8,128)-legal lane tile: the full extent, or a divisor of m that
    is a multiple of 128 and <= max_tile (keeps blocks v7x-64MiB-VMEM safe)."""
    if m <= max_tile or m % 128 != 0:
        return m
    for t in range(max_tile, 127, -128):
        if m % t == 0:
            return t
    return m


def _strided_patches_phase(x_cnhw, kh, kw, ph, pw, taps_pad):
    """Stride-2 im2col for pool phase (ph, pw).

    x: (C, N, H, W) -> (C * taps_pad, N * Hp * Wp), Hp = (H - kh + 1) // 2.
    Row order (c, di*kw+dj), zero-padded to taps_pad per channel (matches the
    packed weight layout); column order (n, i, j).
    """
    C, N, H, W = x_cnhw.shape
    Hp, Wp = (H - kh + 1) // 2, (W - kw + 1) // 2
    taps = []
    for di in range(kh):
        for dj in range(kw):
            taps.append(x_cnhw[:, :,
                               ph + di: ph + di + 2 * Hp: 2,
                               pw + dj: pw + dj + 2 * Wp: 2])     # (C, N, Hp, Wp)
    taps += [jnp.zeros_like(taps[0])] * (taps_pad - kh * kw)
    p = jnp.stack(taps, axis=1)                                   # (C, taps_pad, N, Hp, Wp)
    return p.reshape(C * taps_pad, N * Hp * Wp)


def conv_pool_relu(x_cnhw, w_packed, b_packed, kh, kw, compute_dtype=jnp.float32):
    """relu(maxpool2(conv2d_valid(x))) with padded channels, in one pallas_call.

    x: (C_pad, N, H, W) f32 -> (Cout_pad, N, Hp, Wp) f32.
    """
    C, N, H, W = x_cnhw.shape
    Hp, Wp = (H - kh + 1) // 2, (W - kw + 1) // 2
    cout_pad, K = w_packed.shape
    assert K % C == 0
    taps_pad = K // C
    M = N * Hp * Wp
    tm = _pick_tile(M)

    phases = [
        _strided_patches_phase(x_cnhw, kh, kw, ph, pw, taps_pad).astype(compute_dtype)
        for ph in (0, 1) for pw in (0, 1)
    ]
    full = lambda m: (0, 0)
    tile = lambda m: (0, m)
    out = pl.pallas_call(
        _conv_pool_relu_kernel,
        out_shape=jax.ShapeDtypeStruct((cout_pad, M), jnp.float32),
        grid=(M // tm,),
        in_specs=[pl.BlockSpec((cout_pad, K), full),      # weights (VMEM-resident)
                  pl.BlockSpec((cout_pad, 1), full)]      # bias (f32)
                 + [pl.BlockSpec((K, tm), tile)] * 4,     # 4 pool-phase patch tiles
        out_specs=pl.BlockSpec((cout_pad, tm), tile),
        compiler_params=_PARALLEL_1D,
    )(w_packed.astype(compute_dtype), b_packed, *phases)
    return out.reshape(cout_pad, N, Hp, Wp)


def matmul_bias(w_packed, b_packed, x_km, compute_dtype=jnp.float32):
    """w (Cout_pad, K) @ x (K, M) + b -> (Cout_pad, M), lane-dense output."""
    cout_pad, K = w_packed.shape
    M = x_km.shape[1]
    tm = _pick_tile(M)
    return pl.pallas_call(
        _matmul_bias_kernel,
        out_shape=jax.ShapeDtypeStruct((cout_pad, M), jnp.float32),
        grid=(M // tm,),
        in_specs=[pl.BlockSpec((cout_pad, K), lambda m: (0, 0)),
                  pl.BlockSpec((cout_pad, 1), lambda m: (0, 0)),
                  pl.BlockSpec((K, tm), lambda m: (0, m))],
        out_specs=pl.BlockSpec((cout_pad, tm), lambda m: (0, m)),
        compiler_params=_PARALLEL_1D,
    )(w_packed.astype(compute_dtype), b_packed, x_km.astype(compute_dtype))


# --------------------------------- forward ----------------------------------

def net_forward(x_nchw, pk, compute_dtype=jnp.float32):
    """Exact forward of the PyTorch Net (valid for (N, 1, 28, 28) f32 input)."""
    N = x_nchw.shape[0]
    x = jnp.transpose(x_nchw, (1, 0, 2, 3))                            # (1, N, 28, 28)
    h1 = conv_pool_relu(x, pk["w1"], pk["b1"], 5, 5, compute_dtype)    # (16, N, 12, 12)
    h2 = conv_pool_relu(h1, pk["w2"], pk["b2"], 5, 5, compute_dtype)   # (24, N, 4, 4)
    c2 = h2.shape[0]
    # features per sample in torch .view(N, -1) order: (c, h, w)
    feat = h2.reshape(c2, N, 16).transpose(0, 2, 1).reshape(c2 * 16, N)  # (384, N)
    out = matmul_bias(pk["wf"], pk["bf"], feat, compute_dtype)           # (16, N)
    return out.T[:, :10]                                                 # drop Cout padding


# ---------------------- parameters (torch layout) + packing ------------------

def init_params(key):
    def uconv(k, shape):
        fan_in = shape[1] * shape[2] * shape[3]
        bound = 1.0 / np.sqrt(fan_in)
        return jax.random.uniform(k, shape, jnp.float32, -bound, bound)

    def ulin(k, shape):
        bound = 1.0 / np.sqrt(shape[1])
        return jax.random.uniform(k, shape, jnp.float32, -bound, bound)

    ks = jax.random.split(key, 6)
    return {
        "w1": uconv(ks[0], (10, 1, 5, 5)),
        "b1": jax.random.uniform(ks[1], (10,), jnp.float32, -0.2, 0.2),
        "w2": uconv(ks[2], (20, 10, 5, 5)),
        "b2": jax.random.uniform(ks[3], (20,), jnp.float32, -0.063, 0.063),
        "wf": ulin(ks[4], (10, 320)),
        "bf": jax.random.uniform(ks[5], (10,), jnp.float32, -0.055, 0.055),
    }


def pack_params(p):
    """Statically pack & zero-pad weights for the lane-dense kernels.

    conv1: (10,1,5,5) -> (16, 1*32)   (Cout 10->16, taps 25->32 so K % 8 == 0)
    conv2: (20,10,5,5)-> (24, 16*25)  (Cout 20->24, Cin 10->16 matches conv1 pad)
    fc:    (10, 320)  -> (16, 24*16)  (Cout 10->16, channel dim 20->24)
    Padded rows/channels are exactly zero, so they carry zeros through the net.
    """
    w1 = p["w1"].reshape(10, 1, 25)
    w1 = jnp.pad(w1, ((0, 6), (0, 0), (0, 7))).reshape(16, 32)
    b1 = jnp.pad(p["b1"], (0, 6)).reshape(16, 1)

    w2 = p["w2"].reshape(20, 10, 25)
    w2 = jnp.pad(w2, ((0, 4), (0, 6), (0, 0))).reshape(24, 16 * 25)
    b2 = jnp.pad(p["b2"], (0, 4)).reshape(24, 1)

    wf = p["wf"].reshape(10, 20, 16)
    wf = jnp.pad(wf, ((0, 6), (0, 4), (0, 0))).reshape(16, 24 * 16)
    bf = jnp.pad(p["bf"], (0, 6)).reshape(16, 1)

    return {"w1": w1, "b1": b1, "w2": w2, "b2": b2, "wf": wf, "bf": bf}


# ------------------------------ pure-JAX reference ---------------------------

def reference_forward(x, p):
    def conv(x, w, b):
        y = jax.lax.conv_general_dilated(
            x, w, (1, 1), "VALID", dimension_numbers=("NCHW", "OIHW", "NCHW"))
        return y + b[None, :, None, None]

    def pool_relu(x):  # NCHW
        N, C, H, W = x.shape
        x = x.reshape(N, C, H // 2, 2, W // 2, 2).max(axis=(3, 5))
        return jnp.maximum(x, 0.0)

    h = pool_relu(conv(x, p["w1"], p["b1"]))
    h = pool_relu(conv(h, p["w2"], p["b2"]))
    h = h.reshape(x.shape[0], -1)
    return h @ p["wf"].T + p["bf"]


# ----------------------------------- main ------------------------------------

if __name__ == "__main__":
    key = jax.random.PRNGKey(0)
    pkey, xkey = jax.random.split(key)
    params = init_params(pkey)
    packed = pack_params(params)

    # small batch; 28x28x1 is forced by fc input dim 320 (= 20*4*4).
    x = jax.random.normal(xkey, (2, 1, 28, 28), jnp.float32)

    fwd = jax.jit(net_forward, static_argnames=("compute_dtype",))

    out = jax.block_until_ready(fwd(x, packed))
    assert out.shape == (2, 10), out.shape

    ref = jax.block_until_ready(reference_forward(x, params))
    np.testing.assert_allclose(np.asarray(out), np.asarray(ref), rtol=1e-4, atol=1e-4)

    # bf16 matmul inputs (f32 MXU accumulation): v6e/v7x fast path, loose check.
    out_bf16 = jax.block_until_ready(fwd(x, packed, compute_dtype=jnp.bfloat16))
    np.testing.assert_allclose(np.asarray(out_bf16), np.asarray(ref),
                               rtol=5e-2, atol=5e-2)

    print("KERNEL_OK")
</pallas_src>

<mosaic_0001>
module attributes {stable_mosaic.version = 11 : i64} {
  func.func @_conv_pool_relu_kernel(%arg0: i32, %arg1: memref<16x32xf32, #tpu.memory_space<vmem>>, %arg2: memref<16x1xf32, #tpu.memory_space<vmem>>, %arg3: memref<32x288xf32, #tpu.memory_space<vmem>>, %arg4: memref<32x288xf32, #tpu.memory_space<vmem>>, %arg5: memref<32x288xf32, #tpu.memory_space<vmem>>, %arg6: memref<32x288xf32, #tpu.memory_space<vmem>>, %arg7: memref<16x288xf32, #tpu.memory_space<vmem>>) attributes {dimension_semantics = [#tpu.dimension_semantics<parallel>], iteration_bounds = array<i64: 1>, scalar_prefetch = 0 : i64, scratch_operands = 0 : i64, tpu.core_type = #tpu.core_type<tc>, window_params = [{pipeline_mode = #tpu.pipeline_mode<synchronous>, transform_indices = @transform_0, window_bounds = array<i64: 16, 32>}, {pipeline_mode = #tpu.pipeline_mode<synchronous>, transform_indices = @transform_1, window_bounds = array<i64: 16, 1>}, {transform_indices = @transform_2, window_bounds = array<i64: 32, 288>}, {transform_indices = @transform_3, window_bounds = array<i64: 32, 288>}, {transform_indices = @transform_4, window_bounds = array<i64: 32, 288>}, {transform_indices = @transform_5, window_bounds = array<i64: 32, 288>}, {transform_indices = @transform_6, window_bounds = array<i64: 16, 288>}]} {
    %c0 = arith.constant 0 : index
    %c0_0 = arith.constant 0 : index
    %0 = vector.load %arg1[%c0, %c0_0] : memref<16x32xf32, #tpu.memory_space<vmem>>, vector<16x32xf32>
    %c0_1 = arith.constant 0 : index
    %c0_2 = arith.constant 0 : index
    %1 = vector.load %arg3[%c0_1, %c0_2] : memref<32x288xf32, #tpu.memory_space<vmem>>, vector<32x288xf32>
    %cst = arith.constant dense<0.000000e+00> : vector<16x288xf32>
    %2 = tpu.matmul %0, %1, %cst {dimension_numbers = #tpu.dot_dimension_numbers<[1], [0], [0], [1], [0, 0, 1, 1], [], []>} : vector<16x32xf32>, vector<32x288xf32>, vector<16x288xf32> -> vector<16x288xf32>
    %c0_3 = arith.constant 0 : index
    %c0_4 = arith.constant 0 : index
    %3 = vector.load %arg4[%c0_3, %c0_4] : memref<32x288xf32, #tpu.memory_space<vmem>>, vector<32x288xf32>
    %cst_5 = arith.constant dense<0.000000e+00> : vector<16x288xf32>
    %4 = tpu.matmul %0, %3, %cst_5 {dimension_numbers = #tpu.dot_dimension_numbers<[1], [0], [0], [1], [0, 0, 1, 1], [], []>} : vector<16x32xf32>, vector<32x288xf32>, vector<16x288xf32> -> vector<16x288xf32>
    %5 = arith.maximumf %2, %4 : vector<16x288xf32>
    %c0_6 = arith.constant 0 : index
    %c0_7 = arith.constant 0 : index
    %6 = vector.load %arg5[%c0_6, %c0_7] : memref<32x288xf32, #tpu.memory_space<vmem>>, vector<32x288xf32>
    %cst_8 = arith.constant dense<0.000000e+00> : vector<16x288xf32>
    %7 = tpu.matmul %0, %6, %cst_8 {dimension_numbers = #tpu.dot_dimension_numbers<[1], [0], [0], [1], [0, 0, 1, 1], [], []>} : vector<16x32xf32>, vector<32x288xf32>, vector<16x288xf32> -> vector<16x288xf32>
    %8 = arith.maximumf %5, %7 : vector<16x288xf32>
    %c0_9 = arith.constant 0 : index
    %c0_10 = arith.constant 0 : index
    %9 = vector.load %arg6[%c0_9, %c0_10] : memref<32x288xf32, #tpu.memory_space<vmem>>, vector<32x288xf32>
    %cst_11 = arith.constant dense<0.000000e+00> : vector<16x288xf32>
    %10 = tpu.matmul %0, %9, %cst_11 {dimension_numbers = #tpu.dot_dimension_numbers<[1], [0], [0], [1], [0, 0, 1, 1], [], []>} : vector<16x32xf32>, vector<32x288xf32>, vector<16x288xf32> -> vector<16x288xf32>
    %11 = arith.maximumf %8, %10 : vector<16x288xf32>
    %c0_12 = arith.constant 0 : index
    %c0_13 = arith.constant 0 : index
    %12 = vector.load %arg2[%c0_12, %c0_13] : memref<16x1xf32, #tpu.memory_space<vmem>>, vector<16x1xf32>
    %13 = vector.broadcast %12 : vector<16x1xf32> to vector<16x288xf32>
    %14 = arith.addf %11, %13 : vector<16x288xf32>
    %cst_14 = arith.constant 0.000000e+00 : f32
    %15 = vector.broadcast %cst_14 : f32 to vector<16x288xf32>
    %16 = arith.maximumf %14, %15 : vector<16x288xf32>
    %c0_15 = arith.constant 0 : index
    %c0_16 = arith.constant 0 : index
    %17 = vector.load %arg7[%c0_15, %c0_16] : memref<16x288xf32, #tpu.memory_space<vmem>>, vector<16x288xf32>
    tpu.vector_store %arg7[%c0_15, %c0_16], %16 {strides = array<i32>} : memref<16x288xf32, #tpu.memory_space<vmem>>, vector<16x288xf32>,
    return
  }
  func.func @transform_0(%arg0: i32) -> (i32, i32) {
    %c0_i32 = arith.constant 0 : i32
    %c0_i32_0 = arith.constant 0 : i32
    %c0_i32_1 = arith.constant 0 : i32
    return %c0_i32, %c0_i32_0 : i32, i32
  }
  func.func @transform_1(%arg0: i32) -> (i32, i32) {
    %c0_i32 = arith.constant 0 : i32
    %c0_i32_0 = arith.constant 0 : i32
    %c0_i32_1 = arith.constant 0 : i32
    return %c0_i32, %c0_i32_0 : i32, i32
  }
  func.func @transform_2(%arg0: i32) -> (i32, i32) {
    %c0_i32 = arith.constant 0 : i32
    %c0_i32_0 = arith.constant 0 : i32
    return %c0_i32, %arg0 : i32, i32
  }
  func.func @transform_3(%arg0: i32) -> (i32, i32) {
    %c0_i32 = arith.constant 0 : i32
    %c0_i32_0 = arith.constant 0 : i32
    return %c0_i32, %arg0 : i32, i32
  }
  func.func @transform_4(%arg0: i32) -> (i32, i32) {
    %c0_i32 = arith.constant 0 : i32
    %c0_i32_0 = arith.constant 0 : i32
    return %c0_i32, %arg0 : i32, i32
  }
  func.func @transform_5(%arg0: i32) -> (i32, i32) {
    %c0_i32 = arith.constant 0 : i32
    %c0_i32_0 = arith.constant 0 : i32
    return %c0_i32, %arg0 : i32, i32
  }
  func.func @transform_6(%arg0: i32) -> (i32, i32) {
    %c0_i32 = arith.constant 0 : i32
    %c0_i32_0 = arith.constant 0 : i32
    return %c0_i32, %arg0 : i32, i32
  }
}

module attributes {stable_mosaic.version = 11 : i64} {
  func.func @_matmul_bias_kernel(%arg0: i32, %arg1: memref<16x384xf32, #tpu.memory_space<vmem>>, %arg2: memref<16x1xf32, #tpu.memory_space<vmem>>, %arg3: memref<384x2xf32, #tpu.memory_space<vmem>>, %arg4: memref<16x2xf32, #tpu.memory_space<vmem>>) attributes {dimension_semantics = [#tpu.dimension_semantics<parallel>], iteration_bounds = array<i64: 1>, scalar_prefetch = 0 : i64, scratch_operands = 0 : i64, tpu.core_type = #tpu.core_type<tc>, window_params = [{pipeline_mode = #tpu.pipeline_mode<synchronous>, transform_indices = @transform_0, window_bounds = array<i64: 16, 384>}, {pipeline_mode = #tpu.pipeline_mode<synchronous>, transform_indices = @transform_1, window_bounds = array<i64: 16, 1>}, {transform_indices = @transform_2, window_bounds = array<i64: 384, 2>}, {transform_indices = @transform_3, window_bounds = array<i64: 16, 2>}]} {
    %c0 = arith.constant 0 : index
    %c0_0 = arith.constant 0 : index
    %0 = vector.load %arg1[%c0, %c0_0] : memref<16x384xf32, #tpu.memory_space<vmem>>, vector<16x384xf32>
    %c0_1 = arith.constant 0 : index
    %c0_2 = arith.constant 0 : index
    %1 = vector.load %arg3[%c0_1, %c0_2] : memref<384x2xf32, #tpu.memory_space<vmem>>, vector<384x2xf32>
    %cst = arith.constant dense<0.000000e+00> : vector<16x2xf32>
    %2 = tpu.matmul %0, %1, %cst {dimension_numbers = #tpu.dot_dimension_numbers<[1], [0], [0], [1], [0, 0, 1, 1], [], []>} : vector<16x384xf32>, vector<384x2xf32>, vector<16x2xf32> -> vector<16x2xf32>
    %c0_3 = arith.constant 0 : index
    %c0_4 = arith.constant 0 : index
    %3 = vector.load %arg2[%c0_3, %c0_4] : memref<16x1xf32, #tpu.memory_space<vmem>>, vector<16x1xf32>
    %4 = vector.broadcast %3 : vector<16x1xf32> to vector<16x2xf32>
    %5 = arith.addf %2, %4 : vector<16x2xf32>
    %c0_5 = arith.constant 0 : index
    %c0_6 = arith.constant 0 : index
    %6 = vector.load %arg4[%c0_5, %c0_6] : memref<16x2xf32, #tpu.memory_space<vmem>>, vector<16x2xf32>
    tpu.vector_store %arg4[%c0_5, %c0_6], %5 {strides = array<i32>} : memref<16x2xf32, #tpu.memory_space<vmem>>, vector<16x2xf32>,
    return
  }
  func.func @transform_0(%arg0: i32) -> (i32, i32) {
    %c0_i32 = arith.constant 0 : i32
    %c0_i32_0 = arith.constant 0 : i32
    %c0_i32_1 = arith.constant 0 : i32
    return %c0_i32, %c0_i32_0 : i32, i32
  }
  func.func @transform_1(%arg0: i32) -> (i32, i32) {
    %c0_i32 = arith.constant 0 : i32
    %c0_i32_0 = arith.constant 0 : i32
    %c0_i32_1 = arith.constant 0 : i32
    return %c0_i32, %c0_i32_0 : i32, i32
  }
  func.func @transform_2(%arg0: i32) -> (i32, i32) {
    %c0_i32 = arith.constant 0 : i32
    %c0_i32_0 = arith.constant 0 : i32
    return %c0_i32, %arg0 : i32, i32
  }
  func.func @transform_3(%arg0: i32) -> (i32, i32) {
    %c0_i32 = arith.constant 0 : i32
    %c0_i32_0 = arith.constant 0 : i32
    return %c0_i32, %arg0 : i32, i32
  }
}

module attributes {stable_mosaic.version = 11 : i64} {
  func.func @_conv_pool_relu_kernel(%arg0: i32, %arg1: memref<24x400xf32, #tpu.memory_space<vmem>>, %arg2: memref<24x1xf32, #tpu.memory_space<vmem>>, %arg3: memref<400x32xf32, #tpu.memory_space<vmem>>, %arg4: memref<400x32xf32, #tpu.memory_space<vmem>>, %arg5: memref<400x32xf32, #tpu.memory_space<vmem>>, %arg6: memref<400x32xf32, #tpu.memory_space<vmem>>, %arg7: memref<24x32xf32, #tpu.memory_space<vmem>>) attributes {dimension_semantics = [#tpu.dimension_semantics<parallel>], iteration_bounds = array<i64: 1>, scalar_prefetch = 0 : i64, scratch_operands = 0 : i64, tpu.core_type = #tpu.core_type<tc>, window_params = [{pipeline_mode = #tpu.pipeline_mode<synchronous>, transform_indices = @transform_0, window_bounds = array<i64: 24, 400>}, {pipeline_mode = #tpu.pipeline_mode<synchronous>, transform_indices = @transform_1, window_bounds = array<i64: 24, 1>}, {transform_indices = @transform_2, window_bounds = array<i64: 400, 32>}, {transform_indices = @transform_3, window_bounds = array<i64: 400, 32>}, {transform_indices = @transform_4, window_bounds = array<i64: 400, 32>}, {transform_indices = @transform_5, window_bounds = array<i64: 400, 32>}, {transform_indices = @transform_6, window_bounds = array<i64: 24, 32>}]} {
    %c0 = arith.constant 0 : index
    %c0_0 = arith.constant 0 : index
    %0 = vector.load %arg1[%c0, %c0_0] : memref<24x400xf32, #tpu.memory_space<vmem>>, vector<24x400xf32>
    %c0_1 = arith.constant 0 : index
    %c0_2 = arith.constant 0 : index
    %1 = vector.load %arg3[%c0_1, %c0_2] : memref<400x32xf32, #tpu.memory_space<vmem>>, vector<400x32xf32>
    %cst = arith.constant dense<0.000000e+00> : vector<24x32xf32>
    %2 = tpu.matmul %0, %1, %cst {dimension_numbers = #tpu.dot_dimension_numbers<[1], [0], [0], [1], [0, 0, 1, 1], [], []>} : vector<24x400xf32>, vector<400x32xf32>, vector<24x32xf32> -> vector<24x32xf32>
    %c0_3 = arith.constant 0 : index
    %c0_4 = arith.constant 0 : index
    %3 = vector.load %arg4[%c0_3, %c0_4] : memref<400x32xf32, #tpu.memory_space<vmem>>, vector<400x32xf32>
    %cst_5 = arith.constant dense<0.000000e+00> : vector<24x32xf32>
    %4 = tpu.matmul %0, %3, %cst_5 {dimension_numbers = #tpu.dot_dimension_numbers<[1], [0], [0], [1], [0, 0, 1, 1], [], []>} : vector<24x400xf32>, vector<400x32xf32>, vector<24x32xf32> -> vector<24x32xf32>
    %5 = arith.maximumf %2, %4 : vector<24x32xf32>
    %c0_6 = arith.constant 0 : index
    %c0_7 = arith.constant 0 : index
    %6 = vector.load %arg5[%c0_6, %c0_7] : memref<400x32xf32, #tpu.memory_space<vmem>>, vector<400x32xf32>
    %cst_8 = arith.constant dense<0.000000e+00> : vector<24x32xf32>
    %7 = tpu.matmul %0, %6, %cst_8 {dimension_numbers = #tpu.dot_dimension_numbers<[1], [0], [0], [1], [0, 0, 1, 1], [], []>} : vector<24x400xf32>, vector<400x32xf32>, vector<24x32xf32> -> vector<24x32xf32>
    %8 = arith.maximumf %5, %7 : vector<24x32xf32>
    %c0_9 = arith.constant 0 : index
    %c0_10 = arith.constant 0 : index
    %9 = vector.load %arg6[%c0_9, %c0_10] : memref<400x32xf32, #tpu.memory_space<vmem>>, vector<400x32xf32>
    %cst_11 = arith.constant dense<0.000000e+00> : vector<24x32xf32>
    %10 = tpu.matmul %0, %9, %cst_11 {dimension_numbers = #tpu.dot_dimension_numbers<[1], [0], [0], [1], [0, 0, 1, 1], [], []>} : vector<24x400xf32>, vector<400x32xf32>, vector<24x32xf32> -> vector<24x32xf32>
    %11 = arith.maximumf %8, %10 : vector<24x32xf32>
    %c0_12 = arith.constant 0 : index
    %c0_13 = arith.constant 0 : index
    %12 = vector.load %arg2[%c0_12, %c0_13] : memref<24x1xf32, #tpu.memory_space<vmem>>, vector<24x1xf32>
    %13 = vector.broadcast %12 : vector<24x1xf32> to vector<24x32xf32>
    %14 = arith.addf %11, %13 : vector<24x32xf32>
    %cst_14 = arith.constant 0.000000e+00 : f32
    %15 = vector.broadcast %cst_14 : f32 to vector<24x32xf32>
    %16 = arith.maximumf %14, %15 : vector<24x32xf32>
    %c0_15 = arith.constant 0 : index
    %c0_16 = arith.constant 0 : index
    %17 = vector.load %arg7[%c0_15, %c0_16] : memref<24x32xf32, #tpu.memory_space<vmem>>, vector<24x32xf32>
    tpu.vector_store %arg7[%c0_15, %c0_16], %16 {strides = array<i32>} : memref<24x32xf32, #tpu.memory_space<vmem>>, vector<24x32xf32>,
    return
  }
  func.func @transform_0(%arg0: i32) -> (i32, i32) {
    %c0_i32 = arith.constant 0 : i32
    %c0_i32_0 = arith.constant 0 : i32
    %c0_i32_1 = arith.constant 0 : i32
    return %c0_i32, %c0_i32_0 : i32, i32
  }
  func.func @transform_1(%arg0: i32) -> (i32, i32) {
    %c0_i32 = arith.constant 0 : i32
    %c0_i32_0 = arith.constant 0 : i32
    %c0_i32_1 = arith.constant 0 : i32
    return %c0_i32, %c0_i32_0 : i32, i32
  }
  func.func @transform_2(%arg0: i32) -> (i32, i32) {
    %c0_i32 = arith.constant 0 : i32
    %c0_i32_0 = arith.constant 0 : i32
    return %c0_i32, %arg0 : i32, i32
  }
  func.func @transform_3(%arg0: i32) -> (i32, i32) {
    %c0_i32 = arith.constant 0 : i32
    %c0_i32_0 = arith.constant 0 : i32
    return %c0_i32, %arg0 : i32, i32
  }
  func.func @transform_4(%arg0: i32) -> (i32, i32) {
    %c0_i32 = arith.constant 0 : i32
    %c0_i32_0 = arith.constant 0 : i32
    return %c0_i32, %arg0 : i32, i32
  }
  func.func @transform_5(%arg0: i32) -> (i32, i32) {
    %c0_i32 = arith.constant 0 : i32
    %c0_i32_0 = arith.constant 0 : i32
    return %c0_i32, %arg0 : i32, i32
  }
  func.func @transform_6(%arg0: i32) -> (i32, i32) {
    %c0_i32 = arith.constant 0 : i32
    %c0_i32_0 = arith.constant 0 : i32
    return %c0_i32, %arg0 : i32, i32
  }
}

</mosaic_0001>

<llo_original>
// kernel: net_forward.3
$region0: #{net_forward.3}
  #allocation0 [shape = 'u32[]', space=smem, size = 0x4, offset = 0x4, fixed_abs, tag = 'smem constant byte address 0x4 - core index']
  #allocation1 [shape = 'u32[144,128]{1,0:T(1,128)}', space=vmem, size = 0x12000, scoped, tag = 'internal scratch']
  %s0 = inlined_call_operand.vmem [shape: f32[16,32], index: 0, kind: input, shape index: {}]
  %s1 = inlined_call_operand.vmem [shape: f32[16,1], index: 1, kind: input, shape index: {}]
  %s2 = inlined_call_operand.vmem [shape: f32[32,288], index: 2, kind: input, shape index: {}]
  %s3 = inlined_call_operand.vmem [shape: f32[32,288], index: 3, kind: input, shape index: {}]
  %s4 = inlined_call_operand.vmem [shape: f32[32,288], index: 4, kind: input, shape index: {}]
  %s5 = inlined_call_operand.vmem [shape: f32[32,288], index: 5, kind: input, shape index: {}]
  %s6 = inlined_call_operand.vmem [shape: f32[16,288], index: 6, kind: output, shape index: {}]
  %s7 = sld [smem:[#allocation0]]
  $region34: #{net_forward.3} parent=0
    _
  %s9 = ssub.s32 1, %s7
  %s10 = scalar_select 0, %s9, %s7
  // Predicated region
  $region2: #{net_forward.3} parent=0 // pred_check
    _
  $region3: #{net_forward.3} parent=0 // pred_check_branch
    %12 = sbr.rel (0) target = $region5
  $region4: #{net_forward.3} parent=0 // pred_region
    _
  $region5: #{net_forward.3} parent=0 // pred_fallthru
    _
  // Predicated region
  $region6: #{net_forward.3} parent=0 // pred_check
    _
  $region7: #{net_forward.3} parent=0 // pred_check_branch
    %14 = sbr.rel (0) target = $region9
  $region8: #{net_forward.3} parent=0 // pred_region
    _
  $region9: #{net_forward.3} parent=0 // pred_fallthru
    _
  // Predicated region
  $region10: #{net_forward.3} parent=0 // pred_check
    _
  $region11: #{net_forward.3} parent=0 // pred_check_branch
    %16 = sbr.rel (0) target = $region13
  $region12: #{net_forward.3} parent=0 // pred_region
    _
  $region13: #{net_forward.3} parent=0 // pred_fallthru
    _
  // Predicated region
  $region14: #{net_forward.3} parent=0 // pred_check
    _
  $region15: #{net_forward.3} parent=0 // pred_check_branch
    %18 = sbr.rel (0) target = $region17
  $region16: #{net_forward.3} parent=0 // pred_region
    _
  $region17: #{net_forward.3} parent=0 // pred_fallthru
    _
  // Predicated region
  $region18: #{net_forward.3} parent=0 // pred_check
    _
  $region19: #{net_forward.3} parent=0 // pred_check_branch
    %20 = sbr.rel (0) target = $region21
  $region20: #{net_forward.3} parent=0 // pred_region
    _
  $region21: #{net_forward.3} parent=0 // pred_fallthru
    _
  // Predicated region
  $region22: #{net_forward.3} parent=0 // pred_check
    _
  $region23: #{net_forward.3} parent=0 // pred_check_branch
    %22 = sbr.rel (0) target = $region25
  $region24: #{net_forward.3} parent=0 // pred_region
    _
  $region25: #{net_forward.3} parent=0 // pred_fallthru
    _
  %v23 = vld [vmem:[%s0] sm:$0xff]
  %v24 = vld [vmem:[%s0 + $0x8] sm:$0xff]
  %v25 = vld [vmem:[%s2] sm:$0xff]
  %v26 = vld [vmem:[%s2 + $0x8] sm:$0xff]
  %v27 = vld [vmem:[%s2 + $0x10] sm:$0xff]
  %v28 = vld [vmem:[%s2 + $0x18] sm:$0xff]
  %v29 = vld [vmem:[%s2 + $0x20] sm:$0xff]
  %v30 = vld [vmem:[%s2 + $0x28] sm:$0xff]
  %v31 = vld [vmem:[%s2 + $0x30] sm:$0xff]
  %v32 = vld [vmem:[%s2 + $0x38] sm:$0xff]
  %v33 = vld [vmem:[%s2 + $0x40] sm:$0xff]
  %v34 = vld [vmem:[%s2 + $0x48] sm:$0xff]
  %v35 = vld [vmem:[%s2 + $0x50] sm:$0xff]
  %v36 = vld [vmem:[%s2 + $0x58] sm:$0xff]
  %vm37 = vcmask 261120
  %v39 = vsel %vm37, %v23, 0
  %v42 = vsel %vm37, %v24, 0
  %44 = vmatprep.subr.mxu0 %v26
  %45 = vmatpush1.msra.mxu0 %v25
  %46 = vmatprep.subr.mxu0 %v29
  %47 = vmatpush1.msra.mxu0 %v28
  %48 = vmatprep.subr.mxu0 %v32
  %49 = vmatpush1.msra.mxu0 %v31
  %50 = vmatprep.subr.mxu0 %v35
  %51 = vmatpush1.msra.mxu0 %v34
  %52 = vmatprep.subr.mxu0 0.0
  %53 = vmatpush1.msra.mxu0 0.0
  %54 = vmatprep.subr.mxu0 0.0
  %55 = vmatpush1.msra.mxu0 0.0
  %56 = vmatprep.subr.mxu0 0.0
  %57 = vmatpush1.msra.mxu0 0.0
  %58 = vmatprep.subr.mxu0 0.0
  %59 = vmatpush1.msra.mxu0 0.0
  %60 = vmatprep.subr.mxu0 0.0
  %61 = vmatpush1.msra.mxu0 0.0
  %62 = vmatprep.subr.mxu0 0.0
  %63 = vmatpush1.msra.mxu0 0.0
  %64 = vmatprep.subr.mxu0 0.0
  %65 = vmatpush1.msra.mxu0 0.0
  %66 = vmatprep.subr.mxu0 0.0
  %67 = vmatpush1.msra.mxu0 0.0
  %68 = vmatprep.subr.mxu0 0.0
  %69 = vmatpush1.msra.mxu0 0.0
  %70 = vmatprep.subr.mxu0 0.0
  %71 = vmatpush1.msra.mxu0 0.0
  %72 = vmatprep.subr.mxu0 0.0
  %73 = vmatpush1.msra.mxu0 0.0
  %74 = vmatprep.subr.mxu0 0.0
  %75 = vmatpush1.msra.mxu0 0.0
  %76 = vmatprep.subr.mxu0 0.0
  %77 = vmatpush1.msra.mxu0 0.0
  %78 = vmatprep.subr.mxu0 0.0
  %79 = vmatpush1.msra.mxu0 0.0
  %80 = vmatprep.subr.mxu0 0.0
  %81 = vmatpush1.msra.mxu0 0.0
  %82 = vmatprep.subr.mxu0 0.0
  %83 = vmatpush1.msra.mxu0 0.0
  %84 = vmatprep.subr.mxu0 0.0
  %85 = vmatpush1.msra.mxu0 0.0
  %86 = vmatprep.subr.mxu0 0.0
  %87 = vmatpush1.msra.mxu0 0.0
  %88 = vmatprep.subr.mxu0 0.0
  %89 = vmatpush1.msra.mxu0 0.0
  %90 = vmatprep.subr.mxu0 0.0
  %91 = vmatpush1.msra.mxu0 0.0
  %92 = vmatprep.subr.mxu0 0.0
  %93 = vmatpush1.msra.mxu0 0.0
  %94 = vmatprep.subr.mxu0 0.0
  %95 = vmatpush1.msra.mxu0 0.0
  %96 = vmatprep.subr.mxu0 0.0
  %97 = vmatpush1.msra.mxu0 0.0
  %98 = vmatprep.subr.mxu0 0.0
  %99 = vmatpush1.msra.mxu0 0.0
  %100 = vmatprep.subr.mxu0 0.0
  %101 = vmatpush1.msra.mxu0 0.0
  %102 = vmatprep.subr.mxu0 0.0
  %103 = vmatpush1.msra.mxu0 0.0
  %104 = vmatprep.subr.mxu0 0.0
  %105 = vmatpush1.msra.mxu0 0.0
  %106 = vmatprep.subr.mxu0 0.0
  %107 = vmatpush1.msra.mxu0 0.0
  %108 = vmatprep.mubr.f32.mxu0 0.0
  %109 = vmatmul.mubr.f32.gmra.mrb[0].mxu0 %v39
  %v110 = vpop.f32.mrb[0].mxu0
  %v111 = vadd.f32 0.0, %v110
  %v112 = vpop.f32.mrb[0].mxu0
  %v113 = vadd.f32 0.0, %v112
  %114 = vmatprep.mubr.f32.mxu0 0.0
  %115 = vmatmul.mubr.f32.gmra.mrb[0].mxu0 %v42
  %v116 = vpop.f32.mrb[0].mxu0
  %v117 = vadd.f32 0.0, %v116
  %v118 = vpop.f32.mrb[0].mxu0
  %v119 = vadd.f32 0.0, %v118
  %120 = vdwg.mxu0
  %121 = vmatprep.subr.mxu0 0.0
  %122 = vmatpush1.msra.mxu0 %v27
  %123 = vmatprep.subr.mxu0 0.0
  %124 = vmatpush1.msra.mxu0 %v30
  %125 = vmatprep.subr.mxu0 0.0
  %126 = vmatpush1.msra.mxu0 %v33
  %127 = vmatprep.subr.mxu0 0.0
  %128 = vmatpush1.msra.mxu0 %v36
  %129 = vmatprep.subr.mxu0 0.0
  %130 = vmatpush1.msra.mxu0 0.0
  %131 = vmatprep.subr.mxu0 0.0
  %132 = vmatpush1.msra.mxu0 0.0
  %133 = vmatprep.subr.mxu0 0.0
  %134 = vmatpush1.msra.mxu0 0.0
  %135 = vmatprep.subr.mxu0 0.0
  %136 = vmatpush1.msra.mxu0 0.0
  %137 = vmatprep.subr.mxu0 0.0
  %138 = vmatpush1.msra.mxu0 0.0
  %139 = vmatprep.subr.mxu0 0.0
  %140 = vmatpush1.msra.mxu0 0.0
  %141 = vmatprep.subr.mxu0 0.0
  %142 = vmatpush1.msra.mxu0 0.0
  %143 = vmatprep.subr.mxu0 0.0
  %144 = vmatpush1.msra.mxu0 0.0
  %145 = vmatprep.subr.mxu0 0.0
  %146 = vmatpush1.msra.mxu0 0.0
  %147 = vmatprep.subr.mxu0 0.0
  %148 = vmatpush1.msra.mxu0 0.0
  %149 = vmatprep.subr.mxu0 0.0
  %150 = vmatpush1.msra.mxu0 0.0
  %151 = vmatprep.subr.mxu0 0.0
  %152 = vmatpush1.msra.mxu0 0.0
  %153 = vmatprep.subr.mxu0 0.0
  %154 = vmatpush1.msra.mxu0 0.0
  %155 = vmatprep.subr.mxu0 0.0
  %156 = vmatpush1.msra.mxu0 0.0
  %157 = vmatprep.subr.mxu0 0.0
  %158 = vmatpush1.msra.mxu0 0.0
  %159 = vmatprep.subr.mxu0 0.0
  %160 = vmatpush1.msra.mxu0 0.0
  %161 = vmatprep.subr.mxu0 0.0
  %162 = vmatpush1.msra.mxu0 0.0
  %163 = vmatprep.subr.mxu0 0.0
  %164 = vmatpush1.msra.mxu0 0.0
  %165 = vmatprep.subr.mxu0 0.0
  %166 = vmatpush1.msra.mxu0 0.0
  %167 = vmatprep.subr.mxu0 0.0
  %168 = vmatpush1.msra.mxu0 0.0
  %169 = vmatprep.subr.mxu0 0.0
  %170 = vmatpush1.msra.mxu0 0.0
  %171 = vmatprep.subr.mxu0 0.0
  %172 = vmatpush1.msra.mxu0 0.0
  %173 = vmatprep.subr.mxu0 0.0
  %174 = vmatpush1.msra.mxu0 0.0
  %175 = vmatprep.subr.mxu0 0.0
  %176 = vmatpush1.msra.mxu0 0.0
  %177 = vmatprep.subr.mxu0 0.0
  %178 = vmatpush1.msra.mxu0 0.0
  %179 = vmatprep.subr.mxu0 0.0
  %180 = vmatpush1.msra.mxu0 0.0
  %181 = vmatprep.subr.mxu0 0.0
  %182 = vmatpush1.msra.mxu0 0.0
  %183 = vmatprep.subr.mxu0 0.0
  %184 = vmatpush1.msra.mxu0 0.0
  %185 = vmatprep.mubr.f32.mxu0 0.0
  %186 = vmatmul.mubr.f32.gmra.mrb[0].mxu0 %v39
  %v187 = vpop.f32.mrb[0].mxu0
  %v188 = vadd.f32 0.0, %v187
  %v189 = vpop.f32.mrb[0].mxu0
  %190 = vmatprep.mubr.f32.mxu0 0.0
  %191 = vmatmul.mubr.f32.gmra.mrb[0].mxu0 %v42
  %v192 = vpop.f32.mrb[0].mxu0
  %v193 = vadd.f32 0.0, %v192
  %v194 = vpop.f32.mrb[0].mxu0
  %195 = vdwg.mxu0
  %v196 = vld [vmem:[%s3] sm:$0xff]
  %v197 = vld [vmem:[%s3 + $0x8] sm:$0xff]
  %v198 = vld [vmem:[%s3 + $0x10] sm:$0xff]
  %v199 = vld [vmem:[%s3 + $0x18] sm:$0xff]
  %v200 = vld [vmem:[%s3 + $0x20] sm:$0xff]
  %v201 = vld [vmem:[%s3 + $0x28] sm:$0xff]
  %v202 = vld [vmem:[%s3 + $0x30] sm:$0xff]
  %v203 = vld [vmem:[%s3 + $0x38] sm:$0xff]
  %v204 = vld [vmem:[%s3 + $0x40] sm:$0xff]
  %v205 = vld [vmem:[%s3 + $0x48] sm:$0xff]
  %v206 = vld [vmem:[%s3 + $0x50] sm:$0xff]
  %v207 = vld [vmem:[%s3 + $0x58] sm:$0xff]
  %208 = vmatprep.subr.mxu0 %v197
  %209 = vmatpush1.msra.mxu0 %v196
  %210 = vmatprep.subr.mxu0 %v200
  %211 = vmatpush1.msra.mxu0 %v199
  %212 = vmatprep.subr.mxu0 %v203
  %213 = vmatpush1.msra.mxu0 %v202
  %214 = vmatprep.subr.mxu0 %v206
  %215 = vmatpush1.msra.mxu0 %v205
  %216 = vmatprep.subr.mxu0 0.0
  %217 = vmatpush1.msra.mxu0 0.0
  %218 = vmatprep.subr.mxu0 0.0
  %219 = vmatpush1.msra.mxu0 0.0
  %220 = vmatprep.subr.mxu0 0.0
  %221 = vmatpush1.msra.mxu0 0.0
  %222 = vmatprep.subr.mxu0 0.0
  %223 = vmatpush1.msra.mxu0 0.0
  %224 = vmatprep.subr.mxu0 0.0
  %225 = vmatpush1.msra.mxu0 0.0
  %226 = vmatprep.subr.mxu0 0.0
  %227 = vmatpush1.msra.mxu0 0.0
  %228 = vmatprep.subr.mxu0 0.0
  %229 = vmatpush1.msra.mxu0 0.0
  %230 = vmatprep.subr.mxu0 0.0
  %231 = vmatpush1.msra.mxu0 0.0
  %232 = vmatprep.subr.mxu0 0.0
  %233 = vmatpush1.msra.mxu0 0.0
  %234 = vmatprep.subr.mxu0 0.0
  %235 = vmatpush1.msra.mxu0 0.0
  %236 = vmatprep.subr.mxu0 0.0
  %237 = vmatpush1.msra.mxu0 0.0
  %238 = vmatprep.subr.mxu0 0.0
  %239 = vmatpush1.msra.mxu0 0.0
  %240 = vmatprep.subr.mxu0 0.0
  %241 = vmatpush1.msra.mxu0 0.0
  %242 = vmatprep.subr.mxu0 0.0
  %243 = vmatpush1.msra.mxu0 0.0
  %244 = vmatprep.subr.mxu0 0.0
  %245 = vmatpush1.msra.mxu0 0.0
  %246 = vmatprep.subr.mxu0 0.0
  %247 = vmatpush1.msra.mxu0 0.0
  %248 = vmatprep.subr.mxu0 0.0
  %249 = vmatpush1.msra.mxu0 0.0
  %250 = vmatprep.subr.mxu0 0.0
  %251 = vmatpush1.msra.mxu0 0.0
  %252 = vmatprep.subr.mxu0 0.0
  %253 = vmatpush1.msra.mxu0 0.0
  %254 = vmatprep.subr.mxu0 0.0
  %255 = vmatpush1.msra.mxu0 0.0
  %256 = vmatprep.subr.mxu0 0.0
  %257 = vmatpush1.msra.mxu0 0.0
  %258 = vmatprep.subr.mxu0 0.0
  %259 = vmatpush1.msra.mxu0 0.0
  %260 = vmatprep.subr.mxu0 0.0
  %261 = vmatpush1.msra.mxu0 0.0
  %262 = vmatprep.subr.mxu0 0.0
  %263 = vmatpush1.msra.mxu0 0.0
  %264 = vmatprep.subr.mxu0 0.0
  %265 = vmatpush1.msra.mxu0 0.0
  %266 = vmatprep.subr.mxu0 0.0
  %267 = vmatpush1.msra.mxu0 0.0
  %268 = vmatprep.subr.mxu0 0.0
  %269 = vmatpush1.msra.mxu0 0.0
  %270 = vmatprep.subr.mxu0 0.0
  %271 = vmatpush1.msra.mxu0 0.0
  %272 = vmatprep.mubr.f32.mxu0 0.0
  %273 = vmatmul.mubr.f32.gmra.mrb[0].mxu0 %v39
  %v274 = vpop.f32.mrb[0].mxu0
  %v275 = vadd.f32 0.0, %v274
  %v276 = vpop.f32.mrb[0].mxu0
  %v277 = vadd.f32 0.0, %v276
  %278 = vmatprep.mubr.f32.mxu0 0.0
  %279 = vmatmul.mubr.f32.gmra.mrb[0].mxu0 %v42
  %v280 = vpop.f32.mrb[0].mxu0
  %v281 = vadd.f32 0.0, %v280
  %v282 = vpop.f32.mrb[0].mxu0
  %v283 = vadd.f32 0.0, %v282
  %284 = vdwg.mxu0
  %285 = vmatprep.subr.mxu0 0.0
  %286 = vmatpush1.msra.mxu0 %v198
  %287 = vmatprep.subr.mxu0 0.0
  %288 = vmatpush1.msra.mxu0 %v201
  %289 = vmatprep.subr.mxu0 0.0
  %290 = vmatpush1.msra.mxu0 %v204
  %291 = vmatprep.subr.mxu0 0.0
  %292 = vmatpush1.msra.mxu0 %v207
  %293 = vmatprep.subr.mxu0 0.0
  %294 = vmatpush1.msra.mxu0 0.0
  %295 = vmatprep.subr.mxu0 0.0
  %296 = vmatpush1.msra.mxu0 0.0
  %297 = vmatprep.subr.mxu0 0.0
  %298 = vmatpush1.msra.mxu0 0.0
  %299 = vmatprep.subr.mxu0 0.0
  %300 = vmatpush1.msra.mxu0 0.0
  %301 = vmatprep.subr.mxu0 0.0
  %302 = vmatpush1.msra.mxu0 0.0
  %303 = vmatprep.subr.mxu0 0.0
  %304 = vmatpush1.msra.mxu0 0.0
  %305 = vmatprep.subr.mxu0 0.0
  %306 = vmatpush1.msra.mxu0 0.0
  %307 = vmatprep.subr.mxu0 0.0
  %308 = vmatpush1.msra.mxu0 0.0
  %309 = vmatprep.subr.mxu0 0.0
  %310 = vmatpush1.msra.mxu0 0.0
  %311 = vmatprep.subr.mxu0 0.0
  %312 = vmatpush1.msra.mxu0 0.0
  %313 = vmatprep.subr.mxu0 0.0
  %314 = vmatpush1.msra.mxu0 0.0
  %315 = vmatprep.subr.mxu0 0.0
  %316 = vmatpush1.msra.mxu0 0.0
  %317 = vmatprep.subr.mxu0 0.0
  %318 = vmatpush1.msra.mxu0 0.0
  %319 = vmatprep.subr.mxu0 0.0
  %320 = vmatpush1.msra.mxu0 0.0
  %321 = vmatprep.subr.mxu0 0.0
  %322 = vmatpush1.msra.mxu0 0.0
  %323 = vmatprep.subr.mxu0 0.0
  %324 = vmatpush1.msra.mxu0 0.0
  %325 = vmatprep.subr.mxu0 0.0
  %326 = vmatpush1.msra.mxu0 0.0
  %327 = vmatprep.subr.mxu0 0.0
  %328 = vmatpush1.msra.mxu0 0.0
  %329 = vmatprep.subr.mxu0 0.0
  %330 = vmatpush1.msra.mxu0 0.0
  %331 = vmatprep.subr.mxu0 0.0
  %332 = vmatpush1.msra.mxu0 0.0
  %333 = vmatprep.subr.mxu0 0.0
  %334 = vmatpush1.msra.mxu0 0.0
  %335 = vmatprep.subr.mxu0 0.0
  %336 = vmatpush1.msra.mxu0 0.0
  %337 = vmatprep.subr.mxu0 0.0
  %338 = vmatpush1.msra.mxu0 0.0
  %339 = vmatprep.subr.mxu0 0.0
  %340 = vmatpush1.msra.mxu0 0.0
  %341 = vmatprep.subr.mxu0 0.0
  %342 = vmatpush1.msra.mxu0 0.0
  %343 = vmatprep.subr.mxu0 0.0
  %344 = vmatpush1.msra.mxu0 0.0
  %345 = vmatprep.subr.mxu0 0.0
  %346 = vmatpush1.msra.mxu0 0.0
  %347 = vmatprep.subr.mxu0 0.0
  %348 = vmatpush1.msra.mxu0 0.0
  %349 = vmatprep.mubr.f32.mxu0 0.0
  %350 = vmatmul.mubr.f32.gmra.mrb[0].mxu0 %v39
  %v351 = vpop.f32.mrb[0].mxu0
  %v352 = vadd.f32 0.0, %v351
  %v353 = vpop.f32.mrb[0].mxu0
  %354 = vmatprep.mubr.f32.mxu0 0.0
  %355 = vmatmul.mubr.f32.gmra.mrb[0].mxu0 %v42
  %v356 = vpop.f32.mrb[0].mxu0
  %v357 = vadd.f32 0.0, %v356
  %v358 = vpop.f32.mrb[0].mxu0
  %359 = vdwg.mxu0
  %v360 = vmax.f32 %v111, %v275
  %v361 = vmax.f32 %v113, %v277
  %v362 = vmax.f32 %v188, %v352
  %v363 = vmax.f32 %v117, %v281
  %v364 = vmax.f32 %v119, %v283
  %v365 = vmax.f32 %v193, %v357
  %v366 = vld [vmem:[%s4] sm:$0xff]
  %v367 = vld [vmem:[%s4 + $0x8] sm:$0xff]
  %v368 = vld [vmem:[%s4 + $0x10] sm:$0xff]
  %v369 = vld [vmem:[%s4 + $0x18] sm:$0xff]
  %v370 = vld [vmem:[%s4 + $0x20] sm:$0xff]
  %v371 = vld [vmem:[%s4 + $0x28] sm:$0xff]
  %v372 = vld [vmem:[%s4 + $0x30] sm:$0xff]
  %v373 = vld [vmem:[%s4 + $0x38] sm:$0xff]
  %v374 = vld [vmem:[%s4 + $0x40] sm:$0xff]
  %v375 = vld [vmem:[%s4 + $0x48] sm:$0xff]
  %v376 = vld [vmem:[%s4 + $0x50] sm:$0xff]
  %v377 = vld [vmem:[%s4 + $0x58] sm:$0xff]
  %378 = vmatprep.subr.mxu0 %v367
  %379 = vmatpush1.msra.mxu0 %v366
  %380 = vmatprep.subr.mxu0 %v370
  %381 = vmatpush1.msra.mxu0 %v369
  %382 = vmatprep.subr.mxu0 %v373
  %383 = vmatpush1.msra.mxu0 %v372
  %384 = vmatprep.subr.mxu0 %v376
  %385 = vmatpush1.msra.mxu0 %v375
  %386 = vmatprep.subr.mxu0 0.0
  %387 = vmatpush1.msra.mxu0 0.0
  %388 = vmatprep.subr.mxu0 0.0
  %389 = vmatpush1.msra.mxu0 0.0
  %390 = vmatprep.subr.mxu0 0.0
  %391 = vmatpush1.msra.mxu0 0.0
  %392 = vmatprep.subr.mxu0 0.0
  %393 = vmatpush1.msra.mxu0 0.0
  %394 = vmatprep.subr.mxu0 0.0
  %395 = vmatpush1.msra.mxu0 0.0
  %396 = vmatprep.subr.mxu0 0.0
  %397 = vmatpush1.msra.mxu0 0.0
  %398 = vmatprep.subr.mxu0 0.0
  %399 = vmatpush1.msra.mxu0 0.0
  %400 = vmatprep.subr.mxu0 0.0
  %401 = vmatpush1.msra.mxu0 0.0
  %402 = vmatprep.subr.mxu0 0.0
  %403 = vmatpush1.msra.mxu0 0.0
  %404 = vmatprep.subr.mxu0 0.0
  %405 = vmatpush1.msra.mxu0 0.0
  %406 = vmatprep.subr.mxu0 0.0
  %407 = vmatpush1.msra.mxu0 0.0
  %408 = vmatprep.subr.mxu0 0.0
  %409 = vmatpush1.msra.mxu0 0.0
  %410 = vmatprep.subr.mxu0 0.0
  %411 = vmatpush1.msra.mxu0 0.0
  %412 = vmatprep.subr.mxu0 0.0
  %413 = vmatpush1.msra.mxu0 0.0
  %414 = vmatprep.subr.mxu0 0.0
  %415 = vmatpush1.msra.mxu0 0.0
  %416 = vmatprep.subr.mxu0 0.0
  %417 = vmatpush1.msra.mxu0 0.0
  %418 = vmatprep.subr.mxu0 0.0
  %419 = vmatpush1.msra.mxu0 0.0
  %420 = vmatprep.subr.mxu0 0.0
  %421 = vmatpush1.msra.mxu0 0.0
  %422 = vmatprep.subr.mxu0 0.0
  %423 = vmatpush1.msra.mxu0 0.0
  %424 = vmatprep.subr.mxu0 0.0
  %425 = vmatpush1.msra.mxu0 0.0
  %426 = vmatprep.subr.mxu0 0.0
  %427 = vmatpush1.msra.mxu0 0.0
  %428 = vmatprep.subr.mxu0 0.0
  %429 = vmatpush1.msra.mxu0 0.0
  %430 = vmatprep.subr.mxu0 0.0
  %431 = vmatpush1.msra.mxu0 0.0
  %432 = vmatprep.subr.mxu0 0.0
  %433 = vmatpush1.msra.mxu0 0.0
  %434 = vmatprep.subr.mxu0 0.0
  %435 = vmatpush1.msra.mxu0 0.0
  %436 = vmatprep.subr.mxu0 0.0
  %437 = vmatpush1.msra.mxu0 0.0
  %438 = vmatprep.subr.mxu0 0.0
  %439 = vmatpush1.msra.mxu0 0.0
  %440 = vmatprep.subr.mxu0 0.0
  %441 = vmatpush1.msra.mxu0 0.0
  %442 = vmatprep.mubr.f32.mxu0 0.0
  %443 = vmatmul.mubr.f32.gmra.mrb[0].mxu0 %v39
  %v444 = vpop.f32.mrb[0].mxu0
  %v445 = vadd.f32 0.0, %v444
  %v446 = vpop.f32.mrb[0].mxu0
  %v447 = vadd.f32 0.0, %v446
  %448 = vmatprep.mubr.f32.mxu0 0.0
  %449 = vmatmul.mubr.f32.gmra.mrb[0].mxu0 %v42
  %v450 = vpop.f32.mrb[0].mxu0
  %v451 = vadd.f32 0.0, %v450
  %v452 = vpop.f32.mrb[0].mxu0
  %v453 = vadd.f32 0.0, %v452
  %454 = vdwg.mxu0
  %455 = vmatprep.subr.mxu0 0.0
  %456 = vmatpush1.msra.mxu0 %v368
  %457 = vmatprep.subr.mxu0 0.0
  %458 = vmatpush1.msra.mxu0 %v371
  %459 = vmatprep.subr.mxu0 0.0
  %460 = vmatpush1.msra.mxu0 %v374
  %461 = vmatprep.subr.mxu0 0.0
  %462 = vmatpush1.msra.mxu0 %v377
  %463 = vmatprep.subr.mxu0 0.0
  %464 = vmatpush1.msra.mxu0 0.0
  %465 = vmatprep.subr.mxu0 0.0
  %466 = vmatpush1.msra.mxu0 0.0
  %467 = vmatprep.subr.mxu0 0.0
  %468 = vmatpush1.msra.mxu0 0.0
  %469 = vmatprep.subr.mxu0 0.0
  %470 = vmatpush1.msra.mxu0 0.0
  %471 = vmatprep.subr.mxu0 0.0
  %472 = vmatpush1.msra.mxu0 0.0
  %473 = vmatprep.subr.mxu0 0.0
  %474 = vmatpush1.msra.mxu0 0.0
  %475 = vmatprep.subr.mxu0 0.0
  %476 = vmatpush1.msra.mxu0 0.0
  %477 = vmatprep.subr.mxu0 0.0
  %478 = vmatpush1.msra.mxu0 0.0
  %479 = vmatprep.subr.mxu0 0.0
  %480 = vmatpush1.msra.mxu0 0.0
  %481 = vmatprep.subr.mxu0 0.0
  %482 = vmatpush1.msra.mxu0 0.0
  %483 = vmatprep.subr.mxu0 0.0
  %484 = vmatpush1.msra.mxu0 0.0
  %485 = vmatprep.subr.mxu0 0.0
  %486 = vmatpush1.msra.mxu0 0.0
  %487 = vmatprep.subr.mxu0 0.0
  %488 = vmatpush1.msra.mxu0 0.0
  %489 = vmatprep.subr.mxu0 0.0
  %490 = vmatpush1.msra.mxu0 0.0
  %491 = vmatprep.subr.mxu0 0.0
  %492 = vmatpush1.msra.mxu0 0.0
  %493 = vmatprep.subr.mxu0 0.0
  %494 = vmatpush1.msra.mxu0 0.0
  %495 = vmatprep.subr.mxu0 0.0
  %496 = vmatpush1.msra.mxu0 0.0
  %497 = vmatprep.subr.mxu0 0.0
  %498 = vmatpush1.msra.mxu0 0.0
  %499 = vmatprep.subr.mxu0 0.0
  %500 = vmatpush1.msra.mxu0 0.0
  %501 = vmatprep.subr.mxu0 0.0
  %502 = vmatpush1.msra.mxu0 0.0
  %503 = vmatprep.subr.mxu0 0.0
  %504 = vmatpush1.msra.mxu0 0.0
  %505 = vmatprep.subr.mxu0 0.0
  %506 = vmatpush1.msra.mxu0 0.0
  %507 = vmatprep.subr.mxu0 0.0
  %508 = vmatpush1.msra.mxu0 0.0
  %509 = vmatprep.subr.mxu0 0.0
  %510 = vmatpush1.msra.mxu0 0.0
  %511 = vmatprep.subr.mxu0 0.0
  %512 = vmatpush1.msra.mxu0 0.0
  %513 = vmatprep.subr.mxu0 0.0
  %514 = vmatpush1.msra.mxu0 0.0
  %515 = vmatprep.subr.mxu0 0.0
  %516 = vmatpush1.msra.mxu0 0.0
  %517 = vmatprep.subr.mxu0 0.0
  %518 = vmatpush1.msra.mxu0 0.0
  %519 = vmatprep.mubr.f32.mxu0 0.0
  %520 = vmatmul.mubr.f32.gmra.mrb[0].mxu0 %v39
  %v521 = vpop.f32.mrb[0].mxu0
  %v522 = vadd.f32 0.0, %v521
  %v523 = vpop.f32.mrb[0].mxu0
  %524 = vmatprep.mubr.f32.mxu0 0.0
  %525 = vmatmul.mubr.f32.gmra.mrb[0].mxu0 %v42
  %v526 = vpop.f32.mrb[0].mxu0
  %v527 = vadd.f32 0.0, %v526
  %v528 = vpop.f32.mrb[0].mxu0
  %529 = vdwg.mxu0
  %v530 = vmax.f32 %v360, %v445
  %v531 = vmax.f32 %v361, %v447
  %v532 = vmax.f32 %v362, %v522
  %v533 = vmax.f32 %v363, %v451
  %v534 = vmax.f32 %v364, %v453
  %v535 = vmax.f32 %v365, %v527
  %v536 = vld [vmem:[%s5] sm:$0xff]
  %v537 = vld [vmem:[%s5 + $0x8] sm:$0xff]
  %v538 = vld [vmem:[%s5 + $0x10] sm:$0xff]
  %v539 = vld [vmem:[%s5 + $0x18] sm:$0xff]
  %v540 = vld [vmem:[%s5 + $0x20] sm:$0xff]
  %v541 = vld [vmem:[%s5 + $0x28] sm:$0xff]
  %v542 = vld [vmem:[%s5 + $0x30] sm:$0xff]
  %v543 = vld [vmem:[%s5 + $0x38] sm:$0xff]
  %v544 = vld [vmem:[%s5 + $0x40] sm:$0xff]
  %v545 = vld [vmem:[%s5 + $0x48] sm:$0xff]
  %v546 = vld [vmem:[%s5 + $0x50] sm:$0xff]
  %v547 = vld [vmem:[%s5 + $0x58] sm:$0xff]
  %548 = vmatprep.subr.mxu0 %v537
  %549 = vmatpush1.msra.mxu0 %v536
  %550 = vmatprep.subr.mxu0 %v540
  %551 = vmatpush1.msra.mxu0 %v539
  %552 = vmatprep.subr.mxu0 %v543
  %553 = vmatpush1.msra.mxu0 %v542
  %554 = vmatprep.subr.mxu0 %v546
  %555 = vmatpush1.msra.mxu0 %v545
  %556 = vmatprep.subr.mxu0 0.0
  %557 = vmatpush1.msra.mxu0 0.0
  %558 = vmatprep.subr.mxu0 0.0
  %559 = vmatpush1.msra.mxu0 0.0
  %560 = vmatprep.subr.mxu0 0.0
  %561 = vmatpush1.msra.mxu0 0.0
  %562 = vmatprep.subr.mxu0 0.0
  %563 = vmatpush1.msra.mxu0 0.0
  %564 = vmatprep.subr.mxu0 0.0
  %565 = vmatpush1.msra.mxu0 0.0
  %566 = vmatprep.subr.mxu0 0.0
  %567 = vmatpush1.msra.mxu0 0.0
  %568 = vmatprep.subr.mxu0 0.0
  %569 = vmatpush1.msra.mxu0 0.0
  %570 = vmatprep.subr.mxu0 0.0
  %571 = vmatpush1.msra.mxu0 0.0
  %572 = vmatprep.subr.mxu0 0.0
  %573 = vmatpush1.msra.mxu0 0.0
  %574 = vmatprep.subr.mxu0 0.0
  %575 = vmatpush1.msra.mxu0 0.0
  %576 = vmatprep.subr.mxu0 0.0
  %577 = vmatpush1.msra.mxu0 0.0
  %578 = vmatprep.subr.mxu0 0.0
  %579 = vmatpush1.msra.mxu0 0.0
  %580 = vmatprep.subr.mxu0 0.0
  %581 = vmatpush1.msra.mxu0 0.0
  %582 = vmatprep.subr.mxu0 0.0
  %583 = vmatpush1.msra.mxu0 0.0
  %584 = vmatprep.subr.mxu0 0.0
  %585 = vmatpush1.msra.mxu0 0.0
  %586 = vmatprep.subr.mxu0 0.0
  %587 = vmatpush1.msra.mxu0 0.0
  %588 = vmatprep.subr.mxu0 0.0
  %589 = vmatpush1.msra.mxu0 0.0
  %590 = vmatprep.subr.mxu0 0.0
  %591 = vmatpush1.msra.mxu0 0.0
  %592 = vmatprep.subr.mxu0 0.0
  %593 = vmatpush1.msra.mxu0 0.0
  %594 = vmatprep.subr.mxu0 0.0
  %595 = vmatpush1.msra.mxu0 0.0
  %596 = vmatprep.subr.mxu0 0.0
  %597 = vmatpush1.msra.mxu0 0.0
  %598 = vmatprep.subr.mxu0 0.0
  %599 = vmatpush1.msra.mxu0 0.0
  %600 = vmatprep.subr.mxu0 0.0
  %601 = vmatpush1.msra.mxu0 0.0
  %602 = vmatprep.subr.mxu0 0.0
  %603 = vmatpush1.msra.mxu0 0.0
  %604 = vmatprep.subr.mxu0 0.0
  %605 = vmatpush1.msra.mxu0 0.0
  %606 = vmatprep.subr.mxu0 0.0
  %607 = vmatpush1.msra.mxu0 0.0
  %608 = vmatprep.subr.mxu0 0.0
  %609 = vmatpush1.msra.mxu0 0.0
  %610 = vmatprep.subr.mxu0 0.0
  %611 = vmatpush1.msra.mxu0 0.0
  %612 = vmatprep.mubr.f32.mxu0 0.0
  %613 = vmatmul.mubr.f32.gmra.mrb[0].mxu0 %v39
  %v614 = vpop.f32.mrb[0].mxu0
  %v615 = vadd.f32 0.0, %v614
  %v616 = vpop.f32.mrb[0].mxu0
  %v617 = vadd.f32 0.0, %v616
  %618 = vmatprep.mubr.f32.mxu0 0.0
  %619 = vmatmul.mubr.f32.gmra.mrb[0].mxu0 %v42
  %v620 = vpop.f32.mrb[0].mxu0
  %v621 = vadd.f32 0.0, %v620
  %v622 = vpop.f32.mrb[0].mxu0
  %v623 = vadd.f32 0.0, %v622
  %624 = vdwg.mxu0
  %625 = vmatprep.subr.mxu0 0.0
  %626 = vmatpush1.msra.mxu0 %v538
  %627 = vmatprep.subr.mxu0 0.0
  %628 = vmatpush1.msra.mxu0 %v541
  %629 = vmatprep.subr.mxu0 0.0
  %630 = vmatpush1.msra.mxu0 %v544
  %631 = vmatprep.subr.mxu0 0.0
  %632 = vmatpush1.msra.mxu0 %v547
  %633 = vmatprep.subr.mxu0 0.0
  %634 = vmatpush1.msra.mxu0 0.0
  %635 = vmatprep.subr.mxu0 0.0
  %636 = vmatpush1.msra.mxu0 0.0
  %637 = vmatprep.subr.mxu0 0.0
  %638 = vmatpush1.msra.mxu0 0.0
  %639 = vmatprep.subr.mxu0 0.0
  %640 = vmatpush1.msra.mxu0 0.0
  %641 = vmatprep.subr.mxu0 0.0
  %642 = vmatpush1.msra.mxu0 0.0
  %643 = vmatprep.subr.mxu0 0.0
  %644 = vmatpush1.msra.mxu0 0.0
  %645 = vmatprep.subr.mxu0 0.0
  %646 = vmatpush1.msra.mxu0 0.0
  %647 = vmatprep.subr.mxu0 0.0
  %648 = vmatpush1.msra.mxu0 0.0
  %649 = vmatprep.subr.mxu0 0.0
  %650 = vmatpush1.msra.mxu0 0.0
  %651 = vmatprep.subr.mxu0 0.0
  %652 = vmatpush1.msra.mxu0 0.0
  %653 = vmatprep.subr.mxu0 0.0
  %654 = vmatpush1.msra.mxu0 0.0
  %655 = vmatprep.subr.mxu0 0.0
  %656 = vmatpush1.msra.mxu0 0.0
  %657 = vmatprep.subr.mxu0 0.0
  %658 = vmatpush1.msra.mxu0 0.0
  %659 = vmatprep.subr.mxu0 0.0
  %660 = vmatpush1.msra.mxu0 0.0
  %661 = vmatprep.subr.mxu0 0.0
  %662 = vmatpush1.msra.mxu0 0.0
  %663 = vmatprep.subr.mxu0 0.0
  %664 = vmatpush1.msra.mxu0 0.0
  %665 = vmatprep.subr.mxu0 0.0
  %666 = vmatpush1.msra.mxu0 0.0
  %667 = vmatprep.subr.mxu0 0.0
  %668 = vmatpush1.msra.mxu0 0.0
  %669 = vmatprep.subr.mxu0 0.0
  %670 = vmatpush1.msra.mxu0 0.0
  %671 = vmatprep.subr.mxu0 0.0
  %672 = vmatpush1.msra.mxu0 0.0
  %673 = vmatprep.subr.mxu0 0.0
  %674 = vmatpush1.msra.mxu0 0.0
  %675 = vmatprep.subr.mxu0 0.0
  %676 = vmatpush1.msra.mxu0 0.0
  %677 = vmatprep.subr.mxu0 0.0
  %678 = vmatpush1.msra.mxu0 0.0
  %679 = vmatprep.subr.mxu0 0.0
  %680 = vmatpush1.msra.mxu0 0.0
  %681 = vmatprep.subr.mxu0 0.0
  %682 = vmatpush1.msra.mxu0 0.0
  %683 = vmatprep.subr.mxu0 0.0
  %684 = vmatpush1.msra.mxu0 0.0
  %685 = vmatprep.subr.mxu0 0.0
  %686 = vmatpush1.msra.mxu0 0.0
  %687 = vmatprep.subr.mxu0 0.0
  %688 = vmatpush1.msra.mxu0 0.0
  %689 = vmatprep.mubr.f32.mxu0 0.0
  %690 = vmatmul.mubr.f32.gmra.mrb[0].mxu0 %v39
  %v691 = vpop.f32.mrb[0].mxu0
  %v692 = vadd.f32 0.0, %v691
  %v693 = vpop.f32.mrb[0].mxu0
  %694 = vmatprep.mubr.f32.mxu0 0.0
  %695 = vmatmul.mubr.f32.gmra.mrb[0].mxu0 %v42
  %v696 = vpop.f32.mrb[0].mxu0
  %v697 = vadd.f32 0.0, %v696
  %v698 = vpop.f32.mrb[0].mxu0
  %699 = vdwg.mxu0
  %v700 = vmax.f32 %v530, %v615
  %v701 = vmax.f32 %v531, %v617
  %v702 = vmax.f32 %v532, %v692
  %v703 = vmax.f32 %v533, %v621
  %v704 = vmax.f32 %v534, %v623
  %v705 = vmax.f32 %v535, %v697
  %v706 = vld [vmem:[%s1] sm:$0xff]
  %v707 = vld [vmem:[%s1 + $0x8] sm:$0xff]
  %709 = vset.pattern.permute.xlu0 0
  %710 = vperm.xlu0 %709, %v706
  %v711 = vpop.permute.xlu0 %710
  %714 = vset.pattern.permute.xlu0 0
  %715 = vperm.xlu0 %714, %v707
  %v716 = vpop.permute.xlu0 %715
  %v718 = vadd.f32 %v700, %v711
  %v719 = vadd.f32 %v701, %v711
  %v720 = vadd.f32 %v702, %v711
  %v721 = vadd.f32 %v703, %v716
  %v722 = vadd.f32 %v704, %v716
  %v723 = vadd.f32 %v705, %v716
  %v724 = vmax.f32 %v718, 0.0
  %v725 = vmax.f32 %v719, 0.0
  %v726 = vmax.f32 %v720, 0.0
  %v727 = vmax.f32 %v721, 0.0
  %v728 = vmax.f32 %v722, 0.0
  %v729 = vmax.f32 %v723, 0.0
  %730 = vst [vmem:[%s6] sm:$0xff] %v724
  %731 = vst [vmem:[%s6 + $0x8] sm:$0xff] %v725
  %732 = vst.msk [vmem:[%s6 + $0x10] sm:$0xff] %vm37, %v726
  %733 = vst [vmem:[%s6 + $0x18] sm:$0xff] %v727
  %734 = vst [vmem:[%s6 + $0x20] sm:$0xff] %v728
  %735 = vst.msk [vmem:[%s6 + $0x28] sm:$0xff] %vm37, %v729
  // Predicated region
  $region26: #{net_forward.3} parent=0 // pred_check
    _
  $region27: #{net_forward.3} parent=0 // pred_check_branch
    %737 = sbr.rel (0) target = $region29
  $region28: #{net_forward.3} parent=0 // pred_region
    _
  $region29: #{net_forward.3} parent=0 // pred_fallthru
    _
  // Predicated region
  $region30: #{net_forward.3} parent=0 // pred_check
    _
  $region31: #{net_forward.3} parent=0 // pred_check_branch
    %739 = sbr.rel (0) target = $region33
  $region32: #{net_forward.3} parent=0 // pred_region
    _
  $region33: #{net_forward.3} parent=0 // pred_fallthru
    _

// kernel: net_forward.5
$region0: #{net_forward.5}
  #allocation0 [shape = 'u32[]', space=smem, size = 0x4, offset = 0x4, fixed_abs, tag = 'smem constant byte address 0x4 - core index']
  #allocation1 [shape = 'u32[144,128]{1,0:T(1,128)}', space=vmem, size = 0x12000, scoped, tag = 'internal scratch']
  %s0 = inlined_call_operand.vmem [shape: f32[16,384], index: 0, kind: input, shape index: {}]
  %s1 = inlined_call_operand.vmem [shape: f32[16,1], index: 1, kind: input, shape index: {}]
  %s2 = inlined_call_operand.vmem [shape: f32[384,2], index: 2, kind: input, shape index: {}]
  %s3 = inlined_call_operand.vmem [shape: f32[16,2], index: 3, kind: output, shape index: {}]
  %s4 = sld [smem:[#allocation0]]
  $region22: #{net_forward.5} parent=0
    _
  %s6 = ssub.s32 1, %s4
  %s7 = scalar_select 0, %s6, %s4
  // Predicated region
  $region2: #{net_forward.5} parent=0 // pred_check
    _
  $region3: #{net_forward.5} parent=0 // pred_check_branch
    %9 = sbr.rel (0) target = $region5
  $region4: #{net_forward.5} parent=0 // pred_region
    _
  $region5: #{net_forward.5} parent=0 // pred_fallthru
    _
  // Predicated region
  $region6: #{net_forward.5} parent=0 // pred_check
    _
  $region7: #{net_forward.5} parent=0 // pred_check_branch
    %11 = sbr.rel (0) target = $region9
  $region8: #{net_forward.5} parent=0 // pred_region
    _
  $region9: #{net_forward.5} parent=0 // pred_fallthru
    _
  // Predicated region
  $region10: #{net_forward.5} parent=0 // pred_check
    _
  $region11: #{net_forward.5} parent=0 // pred_check_branch
    %13 = sbr.rel (0) target = $region13
  $region12: #{net_forward.5} parent=0 // pred_region
    _
  $region13: #{net_forward.5} parent=0 // pred_fallthru
    _
  %v14 = vld [vmem:[%s0] sm:$0xff]
  %v15 = vld [vmem:[%s0 + $0x8] sm:$0xff]
  %v16 = vld [vmem:[%s0 + $0x10] sm:$0xff]
  %v17 = vld [vmem:[%s0 + $0x18] sm:$0xff]
  %v18 = vld [vmem:[%s0 + $0x20] sm:$0xff]
  %v19 = vld [vmem:[%s0 + $0x28] sm:$0xff]
  %v20 = vld [vmem:[%s2] sm:$0xff]
  %v21 = vld [vmem:[%s2 + $0x8] sm:$0xff]
  %v22 = vld [vmem:[%s2 + $0x10] sm:$0xff]
  %v23 = vld [vmem:[%s2 + $0x18] sm:$0xff]
  %v24 = vld [vmem:[%s2 + $0x20] sm:$0xff]
  %v25 = vld [vmem:[%s2 + $0x28] sm:$0xff]
  %v26 = vld [vmem:[%s2 + $0x30] sm:$0xff]
  %v27 = vld [vmem:[%s2 + $0x38] sm:$0xff]
  %v28 = vld [vmem:[%s2 + $0x40] sm:$0xff]
  %v29 = vld [vmem:[%s2 + $0x48] sm:$0xff]
  %v30 = vld [vmem:[%s2 + $0x50] sm:$0xff]
  %v31 = vld [vmem:[%s2 + $0x58] sm:$0xff]
  %v32 = vld [vmem:[%s2 + $0x60] sm:$0xff]
  %v33 = vld [vmem:[%s2 + $0x68] sm:$0xff]
  %v34 = vld [vmem:[%s2 + $0x70] sm:$0xff]
  %v35 = vld [vmem:[%s2 + $0x78] sm:$0xff]
  %v36 = vld [vmem:[%s2 + $0x80] sm:$0xff]
  %v37 = vld [vmem:[%s2 + $0x88] sm:$0xff]
  %v38 = vld [vmem:[%s2 + $0x90] sm:$0xff]
  %v39 = vld [vmem:[%s2 + $0x98] sm:$0xff]
  %v40 = vld [vmem:[%s2 + $0xa0] sm:$0xff]
  %v41 = vld [vmem:[%s2 + $0xa8] sm:$0xff]
  %v42 = vld [vmem:[%s2 + $0xb0] sm:$0xff]
  %v43 = vld [vmem:[%s2 + $0xb8] sm:$0xff]
  %v44 = vld [vmem:[%s2 + $0xc0] sm:$0xff]
  %v45 = vld [vmem:[%s2 + $0xc8] sm:$0xff]
  %v46 = vld [vmem:[%s2 + $0xd0] sm:$0xff]
  %v47 = vld [vmem:[%s2 + $0xd8] sm:$0xff]
  %v48 = vld [vmem:[%s2 + $0xe0] sm:$0xff]
  %v49 = vld [vmem:[%s2 + $0xe8] sm:$0xff]
  %v50 = vld [vmem:[%s2 + $0xf0] sm:$0xff]
  %v51 = vld [vmem:[%s2 + $0xf8] sm:$0xff]
  %v52 = vld [vmem:[%s2 + $0x100] sm:$0xff]
  %v53 = vld [vmem:[%s2 + $0x108] sm:$0xff]
  %v54 = vld [vmem:[%s2 + $0x110] sm:$0xff]
  %v55 = vld [vmem:[%s2 + $0x118] sm:$0xff]
  %v56 = vld [vmem:[%s2 + $0x120] sm:$0xff]
  %v57 = vld [vmem:[%s2 + $0x128] sm:$0xff]
  %v58 = vld [vmem:[%s2 + $0x130] sm:$0xff]
  %v59 = vld [vmem:[%s2 + $0x138] sm:$0xff]
  %v60 = vld [vmem:[%s2 + $0x140] sm:$0xff]
  %v61 = vld [vmem:[%s2 + $0x148] sm:$0xff]
  %v62 = vld [vmem:[%s2 + $0x150] sm:$0xff]
  %v63 = vld [vmem:[%s2 + $0x158] sm:$0xff]
  %v64 = vld [vmem:[%s2 + $0x160] sm:$0xff]
  %v65 = vld [vmem:[%s2 + $0x168] sm:$0xff]
  %v66 = vld [vmem:[%s2 + $0x170] sm:$0xff]
  %v67 = vld [vmem:[%s2 + $0x178] sm:$0xff]
  %v68 = vld [vmem:[%s1] sm:$0xff]
  %v69 = vld [vmem:[%s1 + $0x8] sm:$0xff]
  %71 = vset.pattern.permute.xlu0 0
  %72 = vperm.xlu0 %71, %v68
  %v73 = vpop.permute.xlu0 %72
  %76 = vset.pattern.permute.xlu0 0
  %77 = vperm.xlu0 %76, %v69
  %v78 = vpop.permute.xlu0 %77
  %80 = vmatprep.subr.mxu0 0.0
  %81 = vmatpush1.msra.mxu0 %v20
  %82 = vmatprep.subr.mxu0 0.0
  %83 = vmatpush1.msra.mxu0 %v21
  %84 = vmatprep.subr.mxu0 0.0
  %85 = vmatpush1.msra.mxu0 %v22
  %86 = vmatprep.subr.mxu0 0.0
  %87 = vmatpush1.msra.mxu0 %v23
  %88 = vmatprep.subr.mxu0 0.0
  %89 = vmatpush1.msra.mxu0 %v24
  %90 = vmatprep.subr.mxu0 0.0
  %91 = vmatpush1.msra.mxu0 %v25
  %92 = vmatprep.subr.mxu0 0.0
  %93 = vmatpush1.msra.mxu0 %v26
  %94 = vmatprep.subr.mxu0 0.0
  %95 = vmatpush1.msra.mxu0 %v27
  %96 = vmatprep.subr.mxu0 0.0
  %97 = vmatpush1.msra.mxu0 %v28
  %98 = vmatprep.subr.mxu0 0.0
  %99 = vmatpush1.msra.mxu0 %v29
  %100 = vmatprep.subr.mxu0 0.0
  %101 = vmatpush1.msra.mxu0 %v30
  %102 = vmatprep.subr.mxu0 0.0
  %103 = vmatpush1.msra.mxu0 %v31
  %104 = vmatprep.subr.mxu0 0.0
  %105 = vmatpush1.msra.mxu0 %v32
  %106 = vmatprep.subr.mxu0 0.0
  %107 = vmatpush1.msra.mxu0 %v33
  %108 = vmatprep.subr.mxu0 0.0
  %109 = vmatpush1.msra.mxu0 %v34
  %110 = vmatprep.subr.mxu0 0.0
  %111 = vmatpush1.msra.mxu0 %v35
  %112 = vmatprep.subr.mxu0 0.0
  %113 = vmatpush1.msra.mxu0 %v36
  %114 = vmatprep.subr.mxu0 0.0
  %115 = vmatpush1.msra.mxu0 %v37
  %116 = vmatprep.subr.mxu0 0.0
  %117 = vmatpush1.msra.mxu0 %v38
  %118 = vmatprep.subr.mxu0 0.0
  %119 = vmatpush1.msra.mxu0 %v39
  %120 = vmatprep.subr.mxu0 0.0
  %121 = vmatpush1.msra.mxu0 %v40
  %122 = vmatprep.subr.mxu0 0.0
  %123 = vmatpush1.msra.mxu0 %v41
  %124 = vmatprep.subr.mxu0 0.0
  %125 = vmatpush1.msra.mxu0 %v42
  %126 = vmatprep.subr.mxu0 0.0
  %127 = vmatpush1.msra.mxu0 %v43
  %128 = vmatprep.subr.mxu0 0.0
  %129 = vmatpush1.msra.mxu0 %v44
  %130 = vmatprep.subr.mxu0 0.0
  %131 = vmatpush1.msra.mxu0 %v45
  %132 = vmatprep.subr.mxu0 0.0
  %133 = vmatpush1.msra.mxu0 %v46
  %134 = vmatprep.subr.mxu0 0.0
  %135 = vmatpush1.msra.mxu0 %v47
  %136 = vmatprep.subr.mxu0 0.0
  %137 = vmatpush1.msra.mxu0 %v48
  %138 = vmatprep.subr.mxu0 0.0
  %139 = vmatpush1.msra.mxu0 %v49
  %140 = vmatprep.subr.mxu0 0.0
  %141 = vmatpush1.msra.mxu0 %v50
  %142 = vmatprep.subr.mxu0 0.0
  %143 = vmatpush1.msra.mxu0 %v51
  %144 = vmatprep.mubr.f32.mxu0 %v15
  %145 = vmatmul.mubr.f32.gmra.mrb[0].mxu0 %v14
  %v146 = vpop.f32.mrb[0].mxu0
  %v147 = vadd.f32 %v73, %v146
  %v148 = vpop.f32.mrb[0].mxu0
  %149 = vmatprep.mubr.f32.mxu0 %v18
  %150 = vmatmul.mubr.f32.gmra.mrb[0].mxu0 %v17
  %v151 = vpop.f32.mrb[0].mxu0
  %v152 = vadd.f32 %v78, %v151
  %v153 = vpop.f32.mrb[0].mxu0
  %154 = vdwg.mxu0
  %155 = vmatprep.subr.mxu0 0.0
  %156 = vmatpush1.msra.mxu0 %v52
  %157 = vmatprep.subr.mxu0 0.0
  %158 = vmatpush1.msra.mxu0 %v53
  %159 = vmatprep.subr.mxu0 0.0
  %160 = vmatpush1.msra.mxu0 %v54
  %161 = vmatprep.subr.mxu0 0.0
  %162 = vmatpush1.msra.mxu0 %v55
  %163 = vmatprep.subr.mxu0 0.0
  %164 = vmatpush1.msra.mxu0 %v56
  %165 = vmatprep.subr.mxu0 0.0
  %166 = vmatpush1.msra.mxu0 %v57
  %167 = vmatprep.subr.mxu0 0.0
  %168 = vmatpush1.msra.mxu0 %v58
  %169 = vmatprep.subr.mxu0 0.0
  %170 = vmatpush1.msra.mxu0 %v59
  %171 = vmatprep.subr.mxu0 0.0
  %172 = vmatpush1.msra.mxu0 %v60
  %173 = vmatprep.subr.mxu0 0.0
  %174 = vmatpush1.msra.mxu0 %v61
  %175 = vmatprep.subr.mxu0 0.0
  %176 = vmatpush1.msra.mxu0 %v62
  %177 = vmatprep.subr.mxu0 0.0
  %178 = vmatpush1.msra.mxu0 %v63
  %179 = vmatprep.subr.mxu0 0.0
  %180 = vmatpush1.msra.mxu0 %v64
  %181 = vmatprep.subr.mxu0 0.0
  %182 = vmatpush1.msra.mxu0 %v65
  %183 = vmatprep.subr.mxu0 0.0
  %184 = vmatpush1.msra.mxu0 %v66
  %185 = vmatprep.subr.mxu0 0.0
  %186 = vmatpush1.msra.mxu0 %v67
  %187 = vmatprep.subr.mxu0 0.0
  %188 = vmatpush1.msra.mxu0 0.0
  %189 = vmatprep.subr.mxu0 0.0
  %190 = vmatpush1.msra.mxu0 0.0
  %191 = vmatprep.subr.mxu0 0.0
  %192 = vmatpush1.msra.mxu0 0.0
  %193 = vmatprep.subr.mxu0 0.0
  %194 = vmatpush1.msra.mxu0 0.0
  %195 = vmatprep.subr.mxu0 0.0
  %196 = vmatpush1.msra.mxu0 0.0
  %197 = vmatprep.subr.mxu0 0.0
  %198 = vmatpush1.msra.mxu0 0.0
  %199 = vmatprep.subr.mxu0 0.0
  %200 = vmatpush1.msra.mxu0 0.0
  %201 = vmatprep.subr.mxu0 0.0
  %202 = vmatpush1.msra.mxu0 0.0
  %203 = vmatprep.subr.mxu0 0.0
  %204 = vmatpush1.msra.mxu0 0.0
  %205 = vmatprep.subr.mxu0 0.0
  %206 = vmatpush1.msra.mxu0 0.0
  %207 = vmatprep.subr.mxu0 0.0
  %208 = vmatpush1.msra.mxu0 0.0
  %209 = vmatprep.subr.mxu0 0.0
  %210 = vmatpush1.msra.mxu0 0.0
  %211 = vmatprep.subr.mxu0 0.0
  %212 = vmatpush1.msra.mxu0 0.0
  %213 = vmatprep.subr.mxu0 0.0
  %214 = vmatpush1.msra.mxu0 0.0
  %215 = vmatprep.subr.mxu0 0.0
  %216 = vmatpush1.msra.mxu0 0.0
  %217 = vmatprep.subr.mxu0 0.0
  %218 = vmatpush1.msra.mxu0 0.0
  %219 = vmatprep.mubr.f32.mxu0 0.0
  %220 = vmatmul.mubr.f32.gmra.mrb[0].mxu0 %v16
  %v221 = vpop.f32.mrb[0].mxu0
  %v222 = vadd.f32 %v147, %v221
  %v223 = vpop.f32.mrb[0].mxu0
  %224 = vmatprep.mubr.f32.mxu0 0.0
  %225 = vmatmul.mubr.f32.gmra.mrb[0].mxu0 %v19
  %v226 = vpop.f32.mrb[0].mxu0
  %v227 = vadd.f32 %v152, %v226
  %v228 = vpop.f32.mrb[0].mxu0
  %229 = vdwg.mxu0
  %vm230 = vcmask 15360
  %231 = vst.msk [vmem:[%s3] sm:$0xff] %vm230, %v222
  %232 = vst.msk [vmem:[%s3 + $0x8] sm:$0xff] %vm230, %v227
  // Predicated region
  $region14: #{net_forward.5} parent=0 // pred_check
    _
  $region15: #{net_forward.5} parent=0 // pred_check_branch
    %234 = sbr.rel (0) target = $region17
  $region16: #{net_forward.5} parent=0 // pred_region
    _
  $region17: #{net_forward.5} parent=0 // pred_fallthru
    _
  // Predicated region
  $region18: #{net_forward.5} parent=0 // pred_check
    _
  $region19: #{net_forward.5} parent=0 // pred_check_branch
    %236 = sbr.rel (0) target = $region21
  $region20: #{net_forward.5} parent=0 // pred_region
    _
  $region21: #{net_forward.5} parent=0 // pred_fallthru
    _

// kernel: net_forward.4
$region0: #{net_forward.4}
  #allocation0 [shape = 'u32[]', space=smem, size = 0x4, offset = 0x4, fixed_abs, tag = 'smem constant byte address 0x4 - core index']
  #allocation1 [shape = 'u32[144,128]{1,0:T(1,128)}', space=vmem, size = 0x12000, scoped, tag = 'internal scratch']
  %s0 = inlined_call_operand.vmem [shape: f32[24,400], index: 0, kind: input, shape index: {}]
  %s1 = inlined_call_operand.vmem [shape: f32[24,1], index: 1, kind: input, shape index: {}]
  %s2 = inlined_call_operand.vmem [shape: f32[400,32], index: 2, kind: input, shape index: {}]
  %s3 = inlined_call_operand.vmem [shape: f32[400,32], index: 3, kind: input, shape index: {}]
  %s4 = inlined_call_operand.vmem [shape: f32[400,32], index: 4, kind: input, shape index: {}]
  %s5 = inlined_call_operand.vmem [shape: f32[400,32], index: 5, kind: input, shape index: {}]
  %s6 = inlined_call_operand.vmem [shape: f32[24,32], index: 6, kind: output, shape index: {}]
  %s7 = sld [smem:[#allocation0]]
  $region34: #{net_forward.4} parent=0
    _
  %s9 = ssub.s32 1, %s7
  %s10 = scalar_select 0, %s9, %s7
  // Predicated region
  $region2: #{net_forward.4} parent=0 // pred_check
    _
  $region3: #{net_forward.4} parent=0 // pred_check_branch
    %12 = sbr.rel (0) target = $region5
  $region4: #{net_forward.4} parent=0 // pred_region
    _
  $region5: #{net_forward.4} parent=0 // pred_fallthru
    _
  // Predicated region
  $region6: #{net_forward.4} parent=0 // pred_check
    _
  $region7: #{net_forward.4} parent=0 // pred_check_branch
    %14 = sbr.rel (0) target = $region9
  $region8: #{net_forward.4} parent=0 // pred_region
    _
  $region9: #{net_forward.4} parent=0 // pred_fallthru
    _
  // Predicated region
  $region10: #{net_forward.4} parent=0 // pred_check
    _
  $region11: #{net_forward.4} parent=0 // pred_check_branch
    %16 = sbr.rel (0) target = $region13
  $region12: #{net_forward.4} parent=0 // pred_region
    _
  $region13: #{net_forward.4} parent=0 // pred_fallthru
    _
  // Predicated region
  $region14: #{net_forward.4} parent=0 // pred_check
    _
  $region15: #{net_forward.4} parent=0 // pred_check_branch
    %18 = sbr.rel (0) target = $region17
  $region16: #{net_forward.4} parent=0 // pred_region
    _
  $region17: #{net_forward.4} parent=0 // pred_fallthru
    _
  // Predicated region
  $region18: #{net_forward.4} parent=0 // pred_check
    _
  $region19: #{net_forward.4} parent=0 // pred_check_branch
    %20 = sbr.rel (0) target = $region21
  $region20: #{net_forward.4} parent=0 // pred_region
    _
  $region21: #{net_forward.4} parent=0 // pred_fallthru
    _
  // Predicated region
  $region22: #{net_forward.4} parent=0 // pred_check
    _
  $region23: #{net_forward.4} parent=0 // pred_check_branch
    %22 = sbr.rel (0) target = $region25
  $region24: #{net_forward.4} parent=0 // pred_region
    _
  $region25: #{net_forward.4} parent=0 // pred_fallthru
    _
  %v23 = vld [vmem:[%s0] sm:$0xff]
  %v24 = vld [vmem:[%s0 + $0x8] sm:$0xff]
  %v25 = vld [vmem:[%s0 + $0x10] sm:$0xff]
  %v26 = vld [vmem:[%s0 + $0x18] sm:$0xff]
  %v27 = vld [vmem:[%s0 + $0x20] sm:$0xff]
  %v28 = vld [vmem:[%s0 + $0x28] sm:$0xff]
  %v29 = vld [vmem:[%s0 + $0x30] sm:$0xff]
  %v30 = vld [vmem:[%s0 + $0x38] sm:$0xff]
  %v31 = vld [vmem:[%s0 + $0x40] sm:$0xff]
  %v32 = vld [vmem:[%s0 + $0x48] sm:$0xff]
  %v33 = vld [vmem:[%s0 + $0x50] sm:$0xff]
  %v34 = vld [vmem:[%s0 + $0x58] sm:$0xff]
  %v35 = vld [vmem:[%s2] sm:$0xff]
  %v36 = vld [vmem:[%s2 + $0x8] sm:$0xff]
  %v37 = vld [vmem:[%s2 + $0x10] sm:$0xff]
  %v38 = vld [vmem:[%s2 + $0x18] sm:$0xff]
  %v39 = vld [vmem:[%s2 + $0x20] sm:$0xff]
  %v40 = vld [vmem:[%s2 + $0x28] sm:$0xff]
  %v41 = vld [vmem:[%s2 + $0x30] sm:$0xff]
  %v42 = vld [vmem:[%s2 + $0x38] sm:$0xff]
  %v43 = vld [vmem:[%s2 + $0x40] sm:$0xff]
  %v44 = vld [vmem:[%s2 + $0x48] sm:$0xff]
  %v45 = vld [vmem:[%s2 + $0x50] sm:$0xff]
  %v46 = vld [vmem:[%s2 + $0x58] sm:$0xff]
  %v47 = vld [vmem:[%s2 + $0x60] sm:$0xff]
  %v48 = vld [vmem:[%s2 + $0x68] sm:$0xff]
  %v49 = vld [vmem:[%s2 + $0x70] sm:$0xff]
  %v50 = vld [vmem:[%s2 + $0x78] sm:$0xff]
  %v51 = vld [vmem:[%s2 + $0x80] sm:$0xff]
  %v52 = vld [vmem:[%s2 + $0x88] sm:$0xff]
  %v53 = vld [vmem:[%s2 + $0x90] sm:$0xff]
  %v54 = vld [vmem:[%s2 + $0x98] sm:$0xff]
  %v55 = vld [vmem:[%s2 + $0xa0] sm:$0xff]
  %v56 = vld [vmem:[%s2 + $0xa8] sm:$0xff]
  %v57 = vld [vmem:[%s2 + $0xb0] sm:$0xff]
  %v58 = vld [vmem:[%s2 + $0xb8] sm:$0xff]
  %v59 = vld [vmem:[%s2 + $0xc0] sm:$0xff]
  %v60 = vld [vmem:[%s2 + $0xc8] sm:$0xff]
  %v61 = vld [vmem:[%s2 + $0xd0] sm:$0xff]
  %v62 = vld [vmem:[%s2 + $0xd8] sm:$0xff]
  %v63 = vld [vmem:[%s2 + $0xe0] sm:$0xff]
  %v64 = vld [vmem:[%s2 + $0xe8] sm:$0xff]
  %v65 = vld [vmem:[%s2 + $0xf0] sm:$0xff]
  %v66 = vld [vmem:[%s2 + $0xf8] sm:$0xff]
  %v67 = vld [vmem:[%s2 + $0x100] sm:$0xff]
  %v68 = vld [vmem:[%s2 + $0x108] sm:$0xff]
  %v69 = vld [vmem:[%s2 + $0x110] sm:$0xff]
  %v70 = vld [vmem:[%s2 + $0x118] sm:$0xff]
  %v71 = vld [vmem:[%s2 + $0x120] sm:$0xff]
  %v72 = vld [vmem:[%s2 + $0x128] sm:$0xff]
  %v73 = vld [vmem:[%s2 + $0x130] sm:$0xff]
  %v74 = vld [vmem:[%s2 + $0x138] sm:$0xff]
  %v75 = vld [vmem:[%s2 + $0x140] sm:$0xff]
  %v76 = vld [vmem:[%s2 + $0x148] sm:$0xff]
  %v77 = vld [vmem:[%s2 + $0x150] sm:$0xff]
  %v78 = vld [vmem:[%s2 + $0x158] sm:$0xff]
  %v79 = vld [vmem:[%s2 + $0x160] sm:$0xff]
  %v80 = vld [vmem:[%s2 + $0x168] sm:$0xff]
  %v81 = vld [vmem:[%s2 + $0x170] sm:$0xff]
  %v82 = vld [vmem:[%s2 + $0x178] sm:$0xff]
  %v83 = vld [vmem:[%s2 + $0x180] sm:$0xff]
  %v84 = vld [vmem:[%s2 + $0x188] sm:$0xff]
  %vm85 = vcmask 130048
  %v87 = vsel %vm85, %v26, 0
  %v90 = vsel %vm85, %v30, 0
  %v93 = vsel %vm85, %v34, 0
  %95 = vmatprep.subr.mxu0 0.0
  %96 = vmatpush1.msra.mxu0 %v35
  %97 = vmatprep.subr.mxu0 0.0
  %98 = vmatpush1.msra.mxu0 %v36
  %99 = vmatprep.subr.mxu0 0.0
  %100 = vmatpush1.msra.mxu0 %v37
  %101 = vmatprep.subr.mxu0 0.0
  %102 = vmatpush1.msra.mxu0 %v38
  %103 = vmatprep.subr.mxu0 0.0
  %104 = vmatpush1.msra.mxu0 %v39
  %105 = vmatprep.subr.mxu0 0.0
  %106 = vmatpush1.msra.mxu0 %v40
  %107 = vmatprep.subr.mxu0 0.0
  %108 = vmatpush1.msra.mxu0 %v41
  %109 = vmatprep.subr.mxu0 0.0
  %110 = vmatpush1.msra.mxu0 %v42
  %111 = vmatprep.subr.mxu0 0.0
  %112 = vmatpush1.msra.mxu0 %v43
  %113 = vmatprep.subr.mxu0 0.0
  %114 = vmatpush1.msra.mxu0 %v44
  %115 = vmatprep.subr.mxu0 0.0
  %116 = vmatpush1.msra.mxu0 %v45
  %117 = vmatprep.subr.mxu0 0.0
  %118 = vmatpush1.msra.mxu0 %v46
  %119 = vmatprep.subr.mxu0 0.0
  %120 = vmatpush1.msra.mxu0 %v47
  %121 = vmatprep.subr.mxu0 0.0
  %122 = vmatpush1.msra.mxu0 %v48
  %123 = vmatprep.subr.mxu0 0.0
  %124 = vmatpush1.msra.mxu0 %v49
  %125 = vmatprep.subr.mxu0 0.0
  %126 = vmatpush1.msra.mxu0 %v50
  %127 = vmatprep.subr.mxu0 0.0
  %128 = vmatpush1.msra.mxu0 %v51
  %129 = vmatprep.subr.mxu0 0.0
  %130 = vmatpush1.msra.mxu0 %v52
  %131 = vmatprep.subr.mxu0 0.0
  %132 = vmatpush1.msra.mxu0 %v53
  %133 = vmatprep.subr.mxu0 0.0
  %134 = vmatpush1.msra.mxu0 %v54
  %135 = vmatprep.subr.mxu0 0.0
  %136 = vmatpush1.msra.mxu0 %v55
  %137 = vmatprep.subr.mxu0 0.0
  %138 = vmatpush1.msra.mxu0 %v56
  %139 = vmatprep.subr.mxu0 0.0
  %140 = vmatpush1.msra.mxu0 %v57
  %141 = vmatprep.subr.mxu0 0.0
  %142 = vmatpush1.msra.mxu0 %v58
  %143 = vmatprep.subr.mxu0 0.0
  %144 = vmatpush1.msra.mxu0 %v59
  %145 = vmatprep.subr.mxu0 0.0
  %146 = vmatpush1.msra.mxu0 %v60
  %147 = vmatprep.subr.mxu0 0.0
  %148 = vmatpush1.msra.mxu0 %v61
  %149 = vmatprep.subr.mxu0 0.0
  %150 = vmatpush1.msra.mxu0 %v62
  %151 = vmatprep.subr.mxu0 0.0
  %152 = vmatpush1.msra.mxu0 %v63
  %153 = vmatprep.subr.mxu0 0.0
  %154 = vmatpush1.msra.mxu0 %v64
  %155 = vmatprep.subr.mxu0 0.0
  %156 = vmatpush1.msra.mxu0 %v65
  %157 = vmatprep.subr.mxu0 0.0
  %158 = vmatpush1.msra.mxu0 %v66
  %159 = vmatprep.mubr.f32.mxu0 %v24
  %160 = vmatmul.mubr.f32.gmra.mrb[0].mxu0 %v23
  %v161 = vpop.f32.mrb[0].mxu0
  %v162 = vadd.f32 0.0, %v161
  %v163 = vpop.f32.mrb[0].mxu0
  %164 = vmatprep.mubr.f32.mxu0 %v28
  %165 = vmatmul.mubr.f32.gmra.mrb[0].mxu0 %v27
  %v166 = vpop.f32.mrb[0].mxu0
  %v167 = vadd.f32 0.0, %v166
  %v168 = vpop.f32.mrb[0].mxu0
  %169 = vmatprep.mubr.f32.mxu0 %v32
  %170 = vmatmul.mubr.f32.gmra.mrb[0].mxu0 %v31
  %v171 = vpop.f32.mrb[0].mxu0
  %v172 = vadd.f32 0.0, %v171
  %v173 = vpop.f32.mrb[0].mxu0
  %174 = vdwg.mxu0
  %175 = vmatprep.subr.mxu0 0.0
  %176 = vmatpush1.msra.mxu0 %v67
  %177 = vmatprep.subr.mxu0 0.0
  %178 = vmatpush1.msra.mxu0 %v68
  %179 = vmatprep.subr.mxu0 0.0
  %180 = vmatpush1.msra.mxu0 %v69
  %181 = vmatprep.subr.mxu0 0.0
  %182 = vmatpush1.msra.mxu0 %v70
  %183 = vmatprep.subr.mxu0 0.0
  %184 = vmatpush1.msra.mxu0 %v71
  %185 = vmatprep.subr.mxu0 0.0
  %186 = vmatpush1.msra.mxu0 %v72
  %187 = vmatprep.subr.mxu0 0.0
  %188 = vmatpush1.msra.mxu0 %v73
  %189 = vmatprep.subr.mxu0 0.0
  %190 = vmatpush1.msra.mxu0 %v74
  %191 = vmatprep.subr.mxu0 0.0
  %192 = vmatpush1.msra.mxu0 %v75
  %193 = vmatprep.subr.mxu0 0.0
  %194 = vmatpush1.msra.mxu0 %v76
  %195 = vmatprep.subr.mxu0 0.0
  %196 = vmatpush1.msra.mxu0 %v77
  %197 = vmatprep.subr.mxu0 0.0
  %198 = vmatpush1.msra.mxu0 %v78
  %199 = vmatprep.subr.mxu0 0.0
  %200 = vmatpush1.msra.mxu0 %v79
  %201 = vmatprep.subr.mxu0 0.0
  %202 = vmatpush1.msra.mxu0 %v80
  %203 = vmatprep.subr.mxu0 0.0
  %204 = vmatpush1.msra.mxu0 %v81
  %205 = vmatprep.subr.mxu0 0.0
  %206 = vmatpush1.msra.mxu0 %v82
  %207 = vmatprep.subr.mxu0 0.0
  %208 = vmatpush1.msra.mxu0 %v83
  %209 = vmatprep.subr.mxu0 0.0
  %210 = vmatpush1.msra.mxu0 %v84
  %211 = vmatprep.subr.mxu0 0.0
  %212 = vmatpush1.msra.mxu0 0.0
  %213 = vmatprep.subr.mxu0 0.0
  %214 = vmatpush1.msra.mxu0 0.0
  %215 = vmatprep.subr.mxu0 0.0
  %216 = vmatpush1.msra.mxu0 0.0
  %217 = vmatprep.subr.mxu0 0.0
  %218 = vmatpush1.msra.mxu0 0.0
  %219 = vmatprep.subr.mxu0 0.0
  %220 = vmatpush1.msra.mxu0 0.0
  %221 = vmatprep.subr.mxu0 0.0
  %222 = vmatpush1.msra.mxu0 0.0
  %223 = vmatprep.subr.mxu0 0.0
  %224 = vmatpush1.msra.mxu0 0.0
  %225 = vmatprep.subr.mxu0 0.0
  %226 = vmatpush1.msra.mxu0 0.0
  %227 = vmatprep.subr.mxu0 0.0
  %228 = vmatpush1.msra.mxu0 0.0
  %229 = vmatprep.subr.mxu0 0.0
  %230 = vmatpush1.msra.mxu0 0.0
  %231 = vmatprep.subr.mxu0 0.0
  %232 = vmatpush1.msra.mxu0 0.0
  %233 = vmatprep.subr.mxu0 0.0
  %234 = vmatpush1.msra.mxu0 0.0
  %235 = vmatprep.subr.mxu0 0.0
  %236 = vmatpush1.msra.mxu0 0.0
  %237 = vmatprep.subr.mxu0 0.0
  %238 = vmatpush1.msra.mxu0 0.0
  %239 = vmatprep.mubr.f32.mxu0 %v87
  %240 = vmatmul.mubr.f32.gmra.mrb[0].mxu0 %v25
  %v241 = vpop.f32.mrb[0].mxu0
  %v242 = vadd.f32 %v162, %v241
  %v243 = vpop.f32.mrb[0].mxu0
  %244 = vmatprep.mubr.f32.mxu0 %v90
  %245 = vmatmul.mubr.f32.gmra.mrb[0].mxu0 %v29
  %v246 = vpop.f32.mrb[0].mxu0
  %v247 = vadd.f32 %v167, %v246
  %v248 = vpop.f32.mrb[0].mxu0
  %249 = vmatprep.mubr.f32.mxu0 %v93
  %250 = vmatmul.mubr.f32.gmra.mrb[0].mxu0 %v33
  %v251 = vpop.f32.mrb[0].mxu0
  %v252 = vadd.f32 %v172, %v251
  %v253 = vpop.f32.mrb[0].mxu0
  %254 = vdwg.mxu0
  %v255 = vld [vmem:[%s3] sm:$0xff]
  %v256 = vld [vmem:[%s3 + $0x8] sm:$0xff]
  %v257 = vld [vmem:[%s3 + $0x10] sm:$0xff]
  %v258 = vld [vmem:[%s3 + $0x18] sm:$0xff]
  %v259 = vld [vmem:[%s3 + $0x20] sm:$0xff]
  %v260 = vld [vmem:[%s3 + $0x28] sm:$0xff]
  %v261 = vld [vmem:[%s3 + $0x30] sm:$0xff]
  %v262 = vld [vmem:[%s3 + $0x38] sm:$0xff]
  %v263 = vld [vmem:[%s3 + $0x40] sm:$0xff]
  %v264 = vld [vmem:[%s3 + $0x48] sm:$0xff]
  %v265 = vld [vmem:[%s3 + $0x50] sm:$0xff]
  %v266 = vld [vmem:[%s3 + $0x58] sm:$0xff]
  %v267 = vld [vmem:[%s3 + $0x60] sm:$0xff]
  %v268 = vld [vmem:[%s3 + $0x68] sm:$0xff]
  %v269 = vld [vmem:[%s3 + $0x70] sm:$0xff]
  %v270 = vld [vmem:[%s3 + $0x78] sm:$0xff]
  %v271 = vld [vmem:[%s3 + $0x80] sm:$0xff]
  %v272 = vld [vmem:[%s3 + $0x88] sm:$0xff]
  %v273 = vld [vmem:[%s3 + $0x90] sm:$0xff]
  %v274 = vld [vmem:[%s3 + $0x98] sm:$0xff]
  %v275 = vld [vmem:[%s3 + $0xa0] sm:$0xff]
  %v276 = vld [vmem:[%s3 + $0xa8] sm:$0xff]
  %v277 = vld [vmem:[%s3 + $0xb0] sm:$0xff]
  %v278 = vld [vmem:[%s3 + $0xb8] sm:$0xff]
  %v279 = vld [vmem:[%s3 + $0xc0] sm:$0xff]
  %v280 = vld [vmem:[%s3 + $0xc8] sm:$0xff]
  %v281 = vld [vmem:[%s3 + $0xd0] sm:$0xff]
  %v282 = vld [vmem:[%s3 + $0xd8] sm:$0xff]
  %v283 = vld [vmem:[%s3 + $0xe0] sm:$0xff]
  %v284 = vld [vmem:[%s3 + $0xe8] sm:$0xff]
  %v285 = vld [vmem:[%s3 + $0xf0] sm:$0xff]
  %v286 = vld [vmem:[%s3 + $0xf8] sm:$0xff]
  %v287 = vld [vmem:[%s3 + $0x100] sm:$0xff]
  %v288 = vld [vmem:[%s3 + $0x108] sm:$0xff]
  %v289 = vld [vmem:[%s3 + $0x110] sm:$0xff]
  %v290 = vld [vmem:[%s3 + $0x118] sm:$0xff]
  %v291 = vld [vmem:[%s3 + $0x120] sm:$0xff]
  %v292 = vld [vmem:[%s3 + $0x128] sm:$0xff]
  %v293 = vld [vmem:[%s3 + $0x130] sm:$0xff]
  %v294 = vld [vmem:[%s3 + $0x138] sm:$0xff]
  %v295 = vld [vmem:[%s3 + $0x140] sm:$0xff]
  %v296 = vld [vmem:[%s3 + $0x148] sm:$0xff]
  %v297 = vld [vmem:[%s3 + $0x150] sm:$0xff]
  %v298 = vld [vmem:[%s3 + $0x158] sm:$0xff]
  %v299 = vld [vmem:[%s3 + $0x160] sm:$0xff]
  %v300 = vld [vmem:[%s3 + $0x168] sm:$0xff]
  %v301 = vld [vmem:[%s3 + $0x170] sm:$0xff]
  %v302 = vld [vmem:[%s3 + $0x178] sm:$0xff]
  %v303 = vld [vmem:[%s3 + $0x180] sm:$0xff]
  %v304 = vld [vmem:[%s3 + $0x188] sm:$0xff]
  %305 = vmatprep.subr.mxu0 0.0
  %306 = vmatpush1.msra.mxu0 %v255
  %307 = vmatprep.subr.mxu0 0.0
  %308 = vmatpush1.msra.mxu0 %v256
  %309 = vmatprep.subr.mxu0 0.0
  %310 = vmatpush1.msra.mxu0 %v257
  %311 = vmatprep.subr.mxu0 0.0
  %312 = vmatpush1.msra.mxu0 %v258
  %313 = vmatprep.subr.mxu0 0.0
  %314 = vmatpush1.msra.mxu0 %v259
  %315 = vmatprep.subr.mxu0 0.0
  %316 = vmatpush1.msra.mxu0 %v260
  %317 = vmatprep.subr.mxu0 0.0
  %318 = vmatpush1.msra.mxu0 %v261
  %319 = vmatprep.subr.mxu0 0.0
  %320 = vmatpush1.msra.mxu0 %v262
  %321 = vmatprep.subr.mxu0 0.0
  %322 = vmatpush1.msra.mxu0 %v263
  %323 = vmatprep.subr.mxu0 0.0
  %324 = vmatpush1.msra.mxu0 %v264
  %325 = vmatprep.subr.mxu0 0.0
  %326 = vmatpush1.msra.mxu0 %v265
  %327 = vmatprep.subr.mxu0 0.0
  %328 = vmatpush1.msra.mxu0 %v266
  %329 = vmatprep.subr.mxu0 0.0
  %330 = vmatpush1.msra.mxu0 %v267
  %331 = vmatprep.subr.mxu0 0.0
  %332 = vmatpush1.msra.mxu0 %v268
  %333 = vmatprep.subr.mxu0 0.0
  %334 = vmatpush1.msra.mxu0 %v269
  %335 = vmatprep.subr.mxu0 0.0
  %336 = vmatpush1.msra.mxu0 %v270
  %337 = vmatprep.subr.mxu0 0.0
  %338 = vmatpush1.msra.mxu0 %v271
  %339 = vmatprep.subr.mxu0 0.0
  %340 = vmatpush1.msra.mxu0 %v272
  %341 = vmatprep.subr.mxu0 0.0
  %342 = vmatpush1.msra.mxu0 %v273
  %343 = vmatprep.subr.mxu0 0.0
  %344 = vmatpush1.msra.mxu0 %v274
  %345 = vmatprep.subr.mxu0 0.0
  %346 = vmatpush1.msra.mxu0 %v275
  %347 = vmatprep.subr.mxu0 0.0
  %348 = vmatpush1.msra.mxu0 %v276
  %349 = vmatprep.subr.mxu0 0.0
  %350 = vmatpush1.msra.mxu0 %v277
  %351 = vmatprep.subr.mxu0 0.0
  %352 = vmatpush1.msra.mxu0 %v278
  %353 = vmatprep.subr.mxu0 0.0
  %354 = vmatpush1.msra.mxu0 %v279
  %355 = vmatprep.subr.mxu0 0.0
  %356 = vmatpush1.msra.mxu0 %v280
  %357 = vmatprep.subr.mxu0 0.0
  %358 = vmatpush1.msra.mxu0 %v281
  %359 = vmatprep.subr.mxu0 0.0
  %360 = vmatpush1.msra.mxu0 %v282
  %361 = vmatprep.subr.mxu0 0.0
  %362 = vmatpush1.msra.mxu0 %v283
  %363 = vmatprep.subr.mxu0 0.0
  %364 = vmatpush1.msra.mxu0 %v284
  %365 = vmatprep.subr.mxu0 0.0
  %366 = vmatpush1.msra.mxu0 %v285
  %367 = vmatprep.subr.mxu0 0.0
  %368 = vmatpush1.msra.mxu0 %v286
  %369 = vmatprep.mubr.f32.mxu0 %v24
  %370 = vmatmul.mubr.f32.gmra.mrb[0].mxu0 %v23
  %v371 = vpop.f32.mrb[0].mxu0
  %v372 = vadd.f32 0.0, %v371
  %v373 = vpop.f32.mrb[0].mxu0
  %374 = vmatprep.mubr.f32.mxu0 %v28
  %375 = vmatmul.mubr.f32.gmra.mrb[0].mxu0 %v27
  %v376 = vpop.f32.mrb[0].mxu0
  %v377 = vadd.f32 0.0, %v376
  %v378 = vpop.f32.mrb[0].mxu0
  %379 = vmatprep.mubr.f32.mxu0 %v32
  %380 = vmatmul.mubr.f32.gmra.mrb[0].mxu0 %v31
  %v381 = vpop.f32.mrb[0].mxu0
  %v382 = vadd.f32 0.0, %v381
  %v383 = vpop.f32.mrb[0].mxu0
  %384 = vdwg.mxu0
  %385 = vmatprep.subr.mxu0 0.0
  %386 = vmatpush1.msra.mxu0 %v287
  %387 = vmatprep.subr.mxu0 0.0
  %388 = vmatpush1.msra.mxu0 %v288
  %389 = vmatprep.subr.mxu0 0.0
  %390 = vmatpush1.msra.mxu0 %v289
  %391 = vmatprep.subr.mxu0 0.0
  %392 = vmatpush1.msra.mxu0 %v290
  %393 = vmatprep.subr.mxu0 0.0
  %394 = vmatpush1.msra.mxu0 %v291
  %395 = vmatprep.subr.mxu0 0.0
  %396 = vmatpush1.msra.mxu0 %v292
  %397 = vmatprep.subr.mxu0 0.0
  %398 = vmatpush1.msra.mxu0 %v293
  %399 = vmatprep.subr.mxu0 0.0
  %400 = vmatpush1.msra.mxu0 %v294
  %401 = vmatprep.subr.mxu0 0.0
  %402 = vmatpush1.msra.mxu0 %v295
  %403 = vmatprep.subr.mxu0 0.0
  %404 = vmatpush1.msra.mxu0 %v296
  %405 = vmatprep.subr.mxu0 0.0
  %406 = vmatpush1.msra.mxu0 %v297
  %407 = vmatprep.subr.mxu0 0.0
  %408 = vmatpush1.msra.mxu0 %v298
  %409 = vmatprep.subr.mxu0 0.0
  %410 = vmatpush1.msra.mxu0 %v299
  %411 = vmatprep.subr.mxu0 0.0
  %412 = vmatpush1.msra.mxu0 %v300
  %413 = vmatprep.subr.mxu0 0.0
  %414 = vmatpush1.msra.mxu0 %v301
  %415 = vmatprep.subr.mxu0 0.0
  %416 = vmatpush1.msra.mxu0 %v302
  %417 = vmatprep.subr.mxu0 0.0
  %418 = vmatpush1.msra.mxu0 %v303
  %419 = vmatprep.subr.mxu0 0.0
  %420 = vmatpush1.msra.mxu0 %v304
  %421 = vmatprep.subr.mxu0 0.0
  %422 = vmatpush1.msra.mxu0 0.0
  %423 = vmatprep.subr.mxu0 0.0
  %424 = vmatpush1.msra.mxu0 0.0
  %425 = vmatprep.subr.mxu0 0.0
  %426 = vmatpush1.msra.mxu0 0.0
  %427 = vmatprep.subr.mxu0 0.0
  %428 = vmatpush1.msra.mxu0 0.0
  %429 = vmatprep.subr.mxu0 0.0
  %430 = vmatpush1.msra.mxu0 0.0
  %431 = vmatprep.subr.mxu0 0.0
  %432 = vmatpush1.msra.mxu0 0.0
  %433 = vmatprep.subr.mxu0 0.0
  %434 = vmatpush1.msra.mxu0 0.0
  %435 = vmatprep.subr.mxu0 0.0
  %436 = vmatpush1.msra.mxu0 0.0
  %437 = vmatprep.subr.mxu0 0.0
  %438 = vmatpush1.msra.mxu0 0.0
  %439 = vmatprep.subr.mxu0 0.0
  %440 = vmatpush1.msra.mxu0 0.0
  %441 = vmatprep.subr.mxu0 0.0
  %442 = vmatpush1.msra.mxu0 0.0
  %443 = vmatprep.subr.mxu0 0.0
  %444 = vmatpush1.msra.mxu0 0.0
  %445 = vmatprep.subr.mxu0 0.0
  %446 = vmatpush1.msra.mxu0 0.0
  %447 = vmatprep.subr.mxu0 0.0
  %448 = vmatpush1.msra.mxu0 0.0
  %449 = vmatprep.mubr.f32.mxu0 %v87
  %450 = vmatmul.mubr.f32.gmra.mrb[0].mxu0 %v25
  %v451 = vpop.f32.mrb[0].mxu0
  %v452 = vadd.f32 %v372, %v451
  %v453 = vpop.f32.mrb[0].mxu0
  %454 = vmatprep.mubr.f32.mxu0 %v90
  %455 = vmatmul.mubr.f32.gmra.mrb[0].mxu0 %v29
  %v456 = vpop.f32.mrb[0].mxu0
  %v457 = vadd.f32 %v377, %v456
  %v458 = vpop.f32.mrb[0].mxu0
  %459 = vmatprep.mubr.f32.mxu0 %v93
  %460 = vmatmul.mubr.f32.gmra.mrb[0].mxu0 %v33
  %v461 = vpop.f32.mrb[0].mxu0
  %v462 = vadd.f32 %v382, %v461
  %v463 = vpop.f32.mrb[0].mxu0
  %464 = vdwg.mxu0
  %v465 = vmax.f32 %v242, %v452
  %v466 = vmax.f32 %v247, %v457
  %v467 = vmax.f32 %v252, %v462
  %v468 = vld [vmem:[%s4] sm:$0xff]
  %v469 = vld [vmem:[%s4 + $0x8] sm:$0xff]
  %v470 = vld [vmem:[%s4 + $0x10] sm:$0xff]
  %v471 = vld [vmem:[%s4 + $0x18] sm:$0xff]
  %v472 = vld [vmem:[%s4 + $0x20] sm:$0xff]
  %v473 = vld [vmem:[%s4 + $0x28] sm:$0xff]
  %v474 = vld [vmem:[%s4 + $0x30] sm:$0xff]
  %v475 = vld [vmem:[%s4 + $0x38] sm:$0xff]
  %v476 = vld [vmem:[%s4 + $0x40] sm:$0xff]
  %v477 = vld [vmem:[%s4 + $0x48] sm:$0xff]
  %v478 = vld [vmem:[%s4 + $0x50] sm:$0xff]
  %v479 = vld [vmem:[%s4 + $0x58] sm:$0xff]
  %v480 = vld [vmem:[%s4 + $0x60] sm:$0xff]
  %v481 = vld [vmem:[%s4 + $0x68] sm:$0xff]
  %v482 = vld [vmem:[%s4 + $0x70] sm:$0xff]
  %v483 = vld [vmem:[%s4 + $0x78] sm:$0xff]
  %v484 = vld [vmem:[%s4 + $0x80] sm:$0xff]
  %v485 = vld [vmem:[%s4 + $0x88] sm:$0xff]
  %v486 = vld [vmem:[%s4 + $0x90] sm:$0xff]
  %v487 = vld [vmem:[%s4 + $0x98] sm:$0xff]
  %v488 = vld [vmem:[%s4 + $0xa0] sm:$0xff]
  %v489 = vld [vmem:[%s4 + $0xa8] sm:$0xff]
  %v490 = vld [vmem:[%s4 + $0xb0] sm:$0xff]
  %v491 = vld [vmem:[%s4 + $0xb8] sm:$0xff]
  %v492 = vld [vmem:[%s4 + $0xc0] sm:$0xff]
  %v493 = vld [vmem:[%s4 + $0xc8] sm:$0xff]
  %v494 = vld [vmem:[%s4 + $0xd0] sm:$0xff]
  %v495 = vld [vmem:[%s4 + $0xd8] sm:$0xff]
  %v496 = vld [vmem:[%s4 + $0xe0] sm:$0xff]
  %v497 = vld [vmem:[%s4 + $0xe8] sm:$0xff]
  %v498 = vld [vmem:[%s4 + $0xf0] sm:$0xff]
  %v499 = vld [vmem:[%s4 + $0xf8] sm:$0xff]
  %v500 = vld [vmem:[%s4 + $0x100] sm:$0xff]
  %v501 = vld [vmem:[%s4 + $0x108] sm:$0xff]
  %v502 = vld [vmem:[%s4 + $0x110] sm:$0xff]
  %v503 = vld [vmem:[%s4 + $0x118] sm:$0xff]
  %v504 = vld [vmem:[%s4 + $0x120] sm:$0xff]
  %v505 = vld [vmem:[%s4 + $0x128] sm:$0xff]
  %v506 = vld [vmem:[%s4 + $0x130] sm:$0xff]
  %v507 = vld [vmem:[%s4 + $0x138] sm:$0xff]
  %v508 = vld [vmem:[%s4 + $0x140] sm:$0xff]
  %v509 = vld [vmem:[%s4 + $0x148] sm:$0xff]
  %v510 = vld [vmem:[%s4 + $0x150] sm:$0xff]
  %v511 = vld [vmem:[%s4 + $0x158] sm:$0xff]
  %v512 = vld [vmem:[%s4 + $0x160] sm:$0xff]
  %v513 = vld [vmem:[%s4 + $0x168] sm:$0xff]
  %v514 = vld [vmem:[%s4 + $0x170] sm:$0xff]
  %v515 = vld [vmem:[%s4 + $0x178] sm:$0xff]
  %v516 = vld [vmem:[%s4 + $0x180] sm:$0xff]
  %v517 = vld [vmem:[%s4 + $0x188] sm:$0xff]
  %518 = vmatprep.subr.mxu0 0.0
  %519 = vmatpush1.msra.mxu0 %v468
  %520 = vmatprep.subr.mxu0 0.0
  %521 = vmatpush1.msra.mxu0 %v469
  %522 = vmatprep.subr.mxu0 0.0
  %523 = vmatpush1.msra.mxu0 %v470
  %524 = vmatprep.subr.mxu0 0.0
  %525 = vmatpush1.msra.mxu0 %v471
  %526 = vmatprep.subr.mxu0 0.0
  %527 = vmatpush1.msra.mxu0 %v472
  %528 = vmatprep.subr.mxu0 0.0
  %529 = vmatpush1.msra.mxu0 %v473
  %530 = vmatprep.subr.mxu0 0.0
  %531 = vmatpush1.msra.mxu0 %v474
  %532 = vmatprep.subr.mxu0 0.0
  %533 = vmatpush1.msra.mxu0 %v475
  %534 = vmatprep.subr.mxu0 0.0
  %535 = vmatpush1.msra.mxu0 %v476
  %536 = vmatprep.subr.mxu0 0.0
  %537 = vmatpush1.msra.mxu0 %v477
  %538 = vmatprep.subr.mxu0 0.0
  %539 = vmatpush1.msra.mxu0 %v478
  %540 = vmatprep.subr.mxu0 0.0
  %541 = vmatpush1.msra.mxu0 %v479
  %542 = vmatprep.subr.mxu0 0.0
  %543 = vmatpush1.msra.mxu0 %v480
  %544 = vmatprep.subr.mxu0 0.0
  %545 = vmatpush1.msra.mxu0 %v481
  %546 = vmatprep.subr.mxu0 0.0
  %547 = vmatpush1.msra.mxu0 %v482
  %548 = vmatprep.subr.mxu0 0.0
  %549 = vmatpush1.msra.mxu0 %v483
  %550 = vmatprep.subr.mxu0 0.0
  %551 = vmatpush1.msra.mxu0 %v484
  %552 = vmatprep.subr.mxu0 0.0
  %553 = vmatpush1.msra.mxu0 %v485
  %554 = vmatprep.subr.mxu0 0.0
  %555 = vmatpush1.msra.mxu0 %v486
  %556 = vmatprep.subr.mxu0 0.0
  %557 = vmatpush1.msra.mxu0 %v487
  %558 = vmatprep.subr.mxu0 0.0
  %559 = vmatpush1.msra.mxu0 %v488
  %560 = vmatprep.subr.mxu0 0.0
  %561 = vmatpush1.msra.mxu0 %v489
  %562 = vmatprep.subr.mxu0 0.0
  %563 = vmatpush1.msra.mxu0 %v490
  %564 = vmatprep.subr.mxu0 0.0
  %565 = vmatpush1.msra.mxu0 %v491
  %566 = vmatprep.subr.mxu0 0.0
  %567 = vmatpush1.msra.mxu0 %v492
  %568 = vmatprep.subr.mxu0 0.0
  %569 = vmatpush1.msra.mxu0 %v493
  %570 = vmatprep.subr.mxu0 0.0
  %571 = vmatpush1.msra.mxu0 %v494
  %572 = vmatprep.subr.mxu0 0.0
  %573 = vmatpush1.msra.mxu0 %v495
  %574 = vmatprep.subr.mxu0 0.0
  %575 = vmatpush1.msra.mxu0 %v496
  %576 = vmatprep.subr.mxu0 0.0
  %577 = vmatpush1.msra.mxu0 %v497
  %578 = vmatprep.subr.mxu0 0.0
  %579 = vmatpush1.msra.mxu0 %v498
  %580 = vmatprep.subr.mxu0 0.0
  %581 = vmatpush1.msra.mxu0 %v499
  %582 = vmatprep.mubr.f32.mxu0 %v24
  %583 = vmatmul.mubr.f32.gmra.mrb[0].mxu0 %v23
  %v584 = vpop.f32.mrb[0].mxu0
  %v585 = vadd.f32 0.0, %v584
  %v586 = vpop.f32.mrb[0].mxu0
  %587 = vmatprep.mubr.f32.mxu0 %v28
  %588 = vmatmul.mubr.f32.gmra.mrb[0].mxu0 %v27
  %v589 = vpop.f32.mrb[0].mxu0
  %v590 = vadd.f32 0.0, %v589
  %v591 = vpop.f32.mrb[0].mxu0
  %592 = vmatprep.mubr.f32.mxu0 %v32
  %593 = vmatmul.mubr.f32.gmra.mrb[0].mxu0 %v31
  %v594 = vpop.f32.mrb[0].mxu0
  %v595 = vadd.f32 0.0, %v594
  %v596 = vpop.f32.mrb[0].mxu0
  %597 = vdwg.mxu0
  %598 = vmatprep.subr.mxu0 0.0
  %599 = vmatpush1.msra.mxu0 %v500
  %600 = vmatprep.subr.mxu0 0.0
  %601 = vmatpush1.msra.mxu0 %v501
  %602 = vmatprep.subr.mxu0 0.0
  %603 = vmatpush1.msra.mxu0 %v502
  %604 = vmatprep.subr.mxu0 0.0
  %605 = vmatpush1.msra.mxu0 %v503
  %606 = vmatprep.subr.mxu0 0.0
  %607 = vmatpush1.msra.mxu0 %v504
  %608 = vmatprep.subr.mxu0 0.0
  %609 = vmatpush1.msra.mxu0 %v505
  %610 = vmatprep.subr.mxu0 0.0
  %611 = vmatpush1.msra.mxu0 %v506
  %612 = vmatprep.subr.mxu0 0.0
  %613 = vmatpush1.msra.mxu0 %v507
  %614 = vmatprep.subr.mxu0 0.0
  %615 = vmatpush1.msra.mxu0 %v508
  %616 = vmatprep.subr.mxu0 0.0
  %617 = vmatpush1.msra.mxu0 %v509
  %618 = vmatprep.subr.mxu0 0.0
  %619 = vmatpush1.msra.mxu0 %v510
  %620 = vmatprep.subr.mxu0 0.0
  %621 = vmatpush1.msra.mxu0 %v511
  %622 = vmatprep.subr.mxu0 0.0
  %623 = vmatpush1.msra.mxu0 %v512
  %624 = vmatprep.subr.mxu0 0.0
  %625 = vmatpush1.msra.mxu0 %v513
  %626 = vmatprep.subr.mxu0 0.0
  %627 = vmatpush1.msra.mxu0 %v514
  %628 = vmatprep.subr.mxu0 0.0
  %629 = vmatpush1.msra.mxu0 %v515
  %630 = vmatprep.subr.mxu0 0.0
  %631 = vmatpush1.msra.mxu0 %v516
  %632 = vmatprep.subr.mxu0 0.0
  %633 = vmatpush1.msra.mxu0 %v517
  %634 = vmatprep.subr.mxu0 0.0
  %635 = vmatpush1.msra.mxu0 0.0
  %636 = vmatprep.subr.mxu0 0.0
  %637 = vmatpush1.msra.mxu0 0.0
  %638 = vmatprep.subr.mxu0 0.0
  %639 = vmatpush1.msra.mxu0 0.0
  %640 = vmatprep.subr.mxu0 0.0
  %641 = vmatpush1.msra.mxu0 0.0
  %642 = vmatprep.subr.mxu0 0.0
  %643 = vmatpush1.msra.mxu0 0.0
  %644 = vmatprep.subr.mxu0 0.0
  %645 = vmatpush1.msra.mxu0 0.0
  %646 = vmatprep.subr.mxu0 0.0
  %647 = vmatpush1.msra.mxu0 0.0
  %648 = vmatprep.subr.mxu0 0.0
  %649 = vmatpush1.msra.mxu0 0.0
  %650 = vmatprep.subr.mxu0 0.0
  %651 = vmatpush1.msra.mxu0 0.0
  %652 = vmatprep.subr.mxu0 0.0
  %653 = vmatpush1.msra.mxu0 0.0
  %654 = vmatprep.subr.mxu0 0.0
  %655 = vmatpush1.msra.mxu0 0.0
  %656 = vmatprep.subr.mxu0 0.0
  %657 = vmatpush1.msra.mxu0 0.0
  %658 = vmatprep.subr.mxu0 0.0
  %659 = vmatpush1.msra.mxu0 0.0
  %660 = vmatprep.subr.mxu0 0.0
  %661 = vmatpush1.msra.mxu0 0.0
  %662 = vmatprep.mubr.f32.mxu0 %v87
  %663 = vmatmul.mubr.f32.gmra.mrb[0].mxu0 %v25
  %v664 = vpop.f32.mrb[0].mxu0
  %v665 = vadd.f32 %v585, %v664
  %v666 = vpop.f32.mrb[0].mxu0
  %667 = vmatprep.mubr.f32.mxu0 %v90
  %668 = vmatmul.mubr.f32.gmra.mrb[0].mxu0 %v29
  %v669 = vpop.f32.mrb[0].mxu0
  %v670 = vadd.f32 %v590, %v669
  %v671 = vpop.f32.mrb[0].mxu0
  %672 = vmatprep.mubr.f32.mxu0 %v93
  %673 = vmatmul.mubr.f32.gmra.mrb[0].mxu0 %v33
  %v674 = vpop.f32.mrb[0].mxu0
  %v675 = vadd.f32 %v595, %v674
  %v676 = vpop.f32.mrb[0].mxu0
  %677 = vdwg.mxu0
  %v678 = vmax.f32 %v465, %v665
  %v679 = vmax.f32 %v466, %v670
  %v680 = vmax.f32 %v467, %v675
  %v681 = vld [vmem:[%s5] sm:$0xff]
  %v682 = vld [vmem:[%s5 + $0x8] sm:$0xff]
  %v683 = vld [vmem:[%s5 + $0x10] sm:$0xff]
  %v684 = vld [vmem:[%s5 + $0x18] sm:$0xff]
  %v685 = vld [vmem:[%s5 + $0x20] sm:$0xff]
  %v686 = vld [vmem:[%s5 + $0x28] sm:$0xff]
  %v687 = vld [vmem:[%s5 + $0x30] sm:$0xff]
  %v688 = vld [vmem:[%s5 + $0x38] sm:$0xff]
  %v689 = vld [vmem:[%s5 + $0x40] sm:$0xff]
  %v690 = vld [vmem:[%s5 + $0x48] sm:$0xff]
  %v691 = vld [vmem:[%s5 + $0x50] sm:$0xff]
  %v692 = vld [vmem:[%s5 + $0x58] sm:$0xff]
  %v693 = vld [vmem:[%s5 + $0x60] sm:$0xff]
  %v694 = vld [vmem:[%s5 + $0x68] sm:$0xff]
  %v695 = vld [vmem:[%s5 + $0x70] sm:$0xff]
  %v696 = vld [vmem:[%s5 + $0x78] sm:$0xff]
  %v697 = vld [vmem:[%s5 + $0x80] sm:$0xff]
  %v698 = vld [vmem:[%s5 + $0x88] sm:$0xff]
  %v699 = vld [vmem:[%s5 + $0x90] sm:$0xff]
  %v700 = vld [vmem:[%s5 + $0x98] sm:$0xff]
  %v701 = vld [vmem:[%s5 + $0xa0] sm:$0xff]
  %v702 = vld [vmem:[%s5 + $0xa8] sm:$0xff]
  %v703 = vld [vmem:[%s5 + $0xb0] sm:$0xff]
  %v704 = vld [vmem:[%s5 + $0xb8] sm:$0xff]
  %v705 = vld [vmem:[%s5 + $0xc0] sm:$0xff]
  %v706 = vld [vmem:[%s5 + $0xc8] sm:$0xff]
  %v707 = vld [vmem:[%s5 + $0xd0] sm:$0xff]
  %v708 = vld [vmem:[%s5 + $0xd8] sm:$0xff]
  %v709 = vld [vmem:[%s5 + $0xe0] sm:$0xff]
  %v710 = vld [vmem:[%s5 + $0xe8] sm:$0xff]
  %v711 = vld [vmem:[%s5 + $0xf0] sm:$0xff]
  %v712 = vld [vmem:[%s5 + $0xf8] sm:$0xff]
  %v713 = vld [vmem:[%s5 + $0x100] sm:$0xff]
  %v714 = vld [vmem:[%s5 + $0x108] sm:$0xff]
  %v715 = vld [vmem:[%s5 + $0x110] sm:$0xff]
  %v716 = vld [vmem:[%s5 + $0x118] sm:$0xff]
  %v717 = vld [vmem:[%s5 + $0x120] sm:$0xff]
  %v718 = vld [vmem:[%s5 + $0x128] sm:$0xff]
  %v719 = vld [vmem:[%s5 + $0x130] sm:$0xff]
  %v720 = vld [vmem:[%s5 + $0x138] sm:$0xff]
  %v721 = vld [vmem:[%s5 + $0x140] sm:$0xff]
  %v722 = vld [vmem:[%s5 + $0x148] sm:$0xff]
  %v723 = vld [vmem:[%s5 + $0x150] sm:$0xff]
  %v724 = vld [vmem:[%s5 + $0x158] sm:$0xff]
  %v725 = vld [vmem:[%s5 + $0x160] sm:$0xff]
  %v726 = vld [vmem:[%s5 + $0x168] sm:$0xff]
  %v727 = vld [vmem:[%s5 + $0x170] sm:$0xff]
  %v728 = vld [vmem:[%s5 + $0x178] sm:$0xff]
  %v729 = vld [vmem:[%s5 + $0x180] sm:$0xff]
  %v730 = vld [vmem:[%s5 + $0x188] sm:$0xff]
  %731 = vmatprep.subr.mxu0 0.0
  %732 = vmatpush1.msra.mxu0 %v681
  %733 = vmatprep.subr.mxu0 0.0
  %734 = vmatpush1.msra.mxu0 %v682
  %735 = vmatprep.subr.mxu0 0.0
  %736 = vmatpush1.msra.mxu0 %v683
  %737 = vmatprep.subr.mxu0 0.0
  %738 = vmatpush1.msra.mxu0 %v684
  %739 = vmatprep.subr.mxu0 0.0
  %740 = vmatpush1.msra.mxu0 %v685
  %741 = vmatprep.subr.mxu0 0.0
  %742 = vmatpush1.msra.mxu0 %v686
  %743 = vmatprep.subr.mxu0 0.0
  %744 = vmatpush1.msra.mxu0 %v687
  %745 = vmatprep.subr.mxu0 0.0
  %746 = vmatpush1.msra.mxu0 %v688
  %747 = vmatprep.subr.mxu0 0.0
  %748 = vmatpush1.msra.mxu0 %v689
  %749 = vmatprep.subr.mxu0 0.0
  %750 = vmatpush1.msra.mxu0 %v690
  %751 = vmatprep.subr.mxu0 0.0
  %752 = vmatpush1.msra.mxu0 %v691
  %753 = vmatprep.subr.mxu0 0.0
  %754 = vmatpush1.msra.mxu0 %v692
  %755 = vmatprep.subr.mxu0 0.0
  %756 = vmatpush1.msra.mxu0 %v693
  %757 = vmatprep.subr.mxu0 0.0
  %758 = vmatpush1.msra.mxu0 %v694
  %759 = vmatprep.subr.mxu0 0.0
  %760 = vmatpush1.msra.mxu0 %v695
  %761 = vmatprep.subr.mxu0 0.0
  %762 = vmatpush1.msra.mxu0 %v696
  %763 = vmatprep.subr.mxu0 0.0
  %764 = vmatpush1.msra.mxu0 %v697
  %765 = vmatprep.subr.mxu0 0.0
  %766 = vmatpush1.msra.mxu0 %v698
  %767 = vmatprep.subr.mxu0 0.0
  %768 = vmatpush1.msra.mxu0 %v699
  %769 = vmatprep.subr.mxu0 0.0
  %770 = vmatpush1.msra.mxu0 %v700
  %771 = vmatprep.subr.mxu0 0.0
  %772 = vmatpush1.msra.mxu0 %v701
  %773 = vmatprep.subr.mxu0 0.0
  %774 = vmatpush1.msra.mxu0 %v702
  %775 = vmatprep.subr.mxu0 0.0
  %776 = vmatpush1.msra.mxu0 %v703
  %777 = vmatprep.subr.mxu0 0.0
  %778 = vmatpush1.msra.mxu0 %v704
  %779 = vmatprep.subr.mxu0 0.0
  %780 = vmatpush1.msra.mxu0 %v705
  %781 = vmatprep.subr.mxu0 0.0
  %782 = vmatpush1.msra.mxu0 %v706
  %783 = vmatprep.subr.mxu0 0.0
  %784 = vmatpush1.msra.mxu0 %v707
  %785 = vmatprep.subr.mxu0 0.0
  %786 = vmatpush1.msra.mxu0 %v708
  %787 = vmatprep.subr.mxu0 0.0
  %788 = vmatpush1.msra.mxu0 %v709
  %789 = vmatprep.subr.mxu0 0.0
  %790 = vmatpush1.msra.mxu0 %v710
  %791 = vmatprep.subr.mxu0 0.0
  %792 = vmatpush1.msra.mxu0 %v711
  %793 = vmatprep.subr.mxu0 0.0
  %794 = vmatpush1.msra.mxu0 %v712
  %795 = vmatprep.mubr.f32.mxu0 %v24
  %796 = vmatmul.mubr.f32.gmra.mrb[0].mxu0 %v23
  %v797 = vpop.f32.mrb[0].mxu0
  %v798 = vadd.f32 0.0, %v797
  %v799 = vpop.f32.mrb[0].mxu0
  %800 = vmatprep.mubr.f32.mxu0 %v28
  %801 = vmatmul.mubr.f32.gmra.mrb[0].mxu0 %v27
  %v802 = vpop.f32.mrb[0].mxu0
  %v803 = vadd.f32 0.0, %v802
  %v804 = vpop.f32.mrb[0].mxu0
  %805 = vmatprep.mubr.f32.mxu0 %v32
  %806 = vmatmul.mubr.f32.gmra.mrb[0].mxu0 %v31
  %v807 = vpop.f32.mrb[0].mxu0
  %v808 = vadd.f32 0.0, %v807
  %v809 = vpop.f32.mrb[0].mxu0
  %810 = vdwg.mxu0
  %811 = vmatprep.subr.mxu0 0.0
  %812 = vmatpush1.msra.mxu0 %v713
  %813 = vmatprep.subr.mxu0 0.0
  %814 = vmatpush1.msra.mxu0 %v714
  %815 = vmatprep.subr.mxu0 0.0
  %816 = vmatpush1.msra.mxu0 %v715
  %817 = vmatprep.subr.mxu0 0.0
  %818 = vmatpush1.msra.mxu0 %v716
  %819 = vmatprep.subr.mxu0 0.0
  %820 = vmatpush1.msra.mxu0 %v717
  %821 = vmatprep.subr.mxu0 0.0
  %822 = vmatpush1.msra.mxu0 %v718
  %823 = vmatprep.subr.mxu0 0.0
  %824 = vmatpush1.msra.mxu0 %v719
  %825 = vmatprep.subr.mxu0 0.0
  %826 = vmatpush1.msra.mxu0 %v720
  %827 = vmatprep.subr.mxu0 0.0
  %828 = vmatpush1.msra.mxu0 %v721
  %829 = vmatprep.subr.mxu0 0.0
  %830 = vmatpush1.msra.mxu0 %v722
  %831 = vmatprep.subr.mxu0 0.0
  %832 = vmatpush1.msra.mxu0 %v723
  %833 = vmatprep.subr.mxu0 0.0
  %834 = vmatpush1.msra.mxu0 %v724
  %835 = vmatprep.subr.mxu0 0.0
  %836 = vmatpush1.msra.mxu0 %v725
  %837 = vmatprep.subr.mxu0 0.0
  %838 = vmatpush1.msra.mxu0 %v726
  %839 = vmatprep.subr.mxu0 0.0
  %840 = vmatpush1.msra.mxu0 %v727
  %841 = vmatprep.subr.mxu0 0.0
  %842 = vmatpush1.msra.mxu0 %v728
  %843 = vmatprep.subr.mxu0 0.0
  %844 = vmatpush1.msra.mxu0 %v729
  %845 = vmatprep.subr.mxu0 0.0
  %846 = vmatpush1.msra.mxu0 %v730
  %847 = vmatprep.subr.mxu0 0.0
  %848 = vmatpush1.msra.mxu0 0.0
  %849 = vmatprep.subr.mxu0 0.0
  %850 = vmatpush1.msra.mxu0 0.0
  %851 = vmatprep.subr.mxu0 0.0
  %852 = vmatpush1.msra.mxu0 0.0
  %853 = vmatprep.subr.mxu0 0.0
  %854 = vmatpush1.msra.mxu0 0.0
  %855 = vmatprep.subr.mxu0 0.0
  %856 = vmatpush1.msra.mxu0 0.0
  %857 = vmatprep.subr.mxu0 0.0
  %858 = vmatpush1.msra.mxu0 0.0
  %859 = vmatprep.subr.mxu0 0.0
  %860 = vmatpush1.msra.mxu0 0.0
  %861 = vmatprep.subr.mxu0 0.0
  %862 = vmatpush1.msra.mxu0 0.0
  %863 = vmatprep.subr.mxu0 0.0
  %864 = vmatpush1.msra.mxu0 0.0
  %865 = vmatprep.subr.mxu0 0.0
  %866 = vmatpush1.msra.mxu0 0.0
  %867 = vmatprep.subr.mxu0 0.0
  %868 = vmatpush1.msra.mxu0 0.0
  %869 = vmatprep.subr.mxu0 0.0
  %870 = vmatpush1.msra.mxu0 0.0
  %871 = vmatprep.subr.mxu0 0.0
  %872 = vmatpush1.msra.mxu0 0.0
  %873 = vmatprep.subr.mxu0 0.0
  %874 = vmatpush1.msra.mxu0 0.0
  %875 = vmatprep.mubr.f32.mxu0 %v87
  %876 = vmatmul.mubr.f32.gmra.mrb[0].mxu0 %v25
  %v877 = vpop.f32.mrb[0].mxu0
  %v878 = vadd.f32 %v798, %v877
  %v879 = vpop.f32.mrb[0].mxu0
  %880 = vmatprep.mubr.f32.mxu0 %v90
  %881 = vmatmul.mubr.f32.gmra.mrb[0].mxu0 %v29
  %v882 = vpop.f32.mrb[0].mxu0
  %v883 = vadd.f32 %v803, %v882
  %v884 = vpop.f32.mrb[0].mxu0
  %885 = vmatprep.mubr.f32.mxu0 %v93
  %886 = vmatmul.mubr.f32.gmra.mrb[0].mxu0 %v33
  %v887 = vpop.f32.mrb[0].mxu0
  %v888 = vadd.f32 %v808, %v887
  %v889 = vpop.f32.mrb[0].mxu0
  %890 = vdwg.mxu0
  %v891 = vmax.f32 %v678, %v878
  %v892 = vmax.f32 %v679, %v883
  %v893 = vmax.f32 %v680, %v888
  %v894 = vld [vmem:[%s1] sm:$0xff]
  %v895 = vld [vmem:[%s1 + $0x8] sm:$0xff]
  %v896 = vld [vmem:[%s1 + $0x10] sm:$0xff]
  %898 = vset.pattern.permute.xlu0 0
  %899 = vperm.xlu0 %898, %v894
  %v900 = vpop.permute.xlu0 %899
  %903 = vset.pattern.permute.xlu0 0
  %904 = vperm.xlu0 %903, %v895
  %v905 = vpop.permute.xlu0 %904
  %908 = vset.pattern.permute.xlu0 0
  %909 = vperm.xlu0 %908, %v896
  %v910 = vpop.permute.xlu0 %909
  %v912 = vadd.f32 %v891, %v900
  %v913 = vadd.f32 %v892, %v905
  %v914 = vadd.f32 %v893, %v910
  %v915 = vmax.f32 %v912, 0.0
  %v916 = vmax.f32 %v913, 0.0
  %v917 = vmax.f32 %v914, 0.0
  %vm918 = vcmask 261120
  %919 = vst.msk [vmem:[%s6] sm:$0xff] %vm918, %v915
  %920 = vst.msk [vmem:[%s6 + $0x8] sm:$0xff] %vm918, %v916
  %921 = vst.msk [vmem:[%s6 + $0x10] sm:$0xff] %vm918, %v917
  // Predicated region
  $region26: #{net_forward.4} parent=0 // pred_check
    _
  $region27: #{net_forward.4} parent=0 // pred_check_branch
    %923 = sbr.rel (0) target = $region29
  $region28: #{net_forward.4} parent=0 // pred_region
    _
  $region29: #{net_forward.4} parent=0 // pred_fallthru
    _
  // Predicated region
  $region30: #{net_forward.4} parent=0 // pred_check
    _
  $region31: #{net_forward.4} parent=0 // pred_check_branch
    %925 = sbr.rel (0) target = $region33
  $region32: #{net_forward.4} parent=0 // pred_region
    _
  $region33: #{net_forward.4} parent=0 // pred_fallthru
    _

</llo_original>
